<compile_context>
chip_gen: v5e
topology: v5e:2x2
jax: 0.10.0
libtpu: 0.0.40
codegen_flags: <defaults>
</compile_context>

<pallas_src>
import functools

import jax
import jax.numpy as jnp
from jax.experimental import pallas as pl
from jax.experimental.pallas import tpu as pltpu

CHN_MID = 32
EPS = 0.1
_N_FEATS = 5      # (d0, d1, d0-d1, d0/(d1+eps), d1/(d0+eps))
_FEATS_PAD = 8    # pad the contraction dim to a full sublane group for the MXU
_MAX_TILE_N = 32768


def _round_up(x, m):
    return (x + m - 1) // m * m


def _bce_ranking_kernel(x_ref, w1_ref, w2_ref, b2_ref, w3_ref, b3_ref,
                        out_ref, feat_ref, acc_ref,
                        *, n_valid, tile_n, tiles_per_split):
    c = pl.program_id(0)      # "parallel" split (one per TensorCore on v7x)
    t = pl.program_id(1)      # "arbitrary" accumulation axis over tiles

    @pl.when(t == 0)
    def _init():
        acc_ref[...] = jnp.zeros_like(acc_ref)
        # Row 5 is the constant-1 "bias feature" (b1 is folded into W1 column 5);
        # rows 6..7 meet zero-padded W1 columns, so zero them once.
        feat_ref[_N_FEATS:_N_FEATS + 1, :] = jnp.ones((1, tile_n), jnp.float32)
        feat_ref[_N_FEATS + 1:_FEATS_PAD, :] = jnp.zeros(
            (_FEATS_PAD - _N_FEATS - 1, tile_n), jnp.float32)

    x = x_ref[...]            # (3, tile_n): rows = d0, d1, judge; batch on lanes
    d0 = x[0:1, :]
    d1 = x[1:2, :]
    judge = x[2:3, :]

    inv_d1 = pl.reciprocal(d1 + EPS, approx=True)
    inv_d0 = pl.reciprocal(d0 + EPS, approx=True)

    # Feature matrix (features on sublanes, batch on lanes) staged in VMEM so that
    # layer 1 is a dense (chn, 8) @ (8, tile_n) MXU matmul.
    feat_ref[0:1, :] = d0
    feat_ref[1:2, :] = d1
    feat_ref[2:3, :] = d0 - d1
    feat_ref[3:4, :] = d0 * inv_d1
    feat_ref[4:5, :] = d1 * inv_d0

    h = jnp.dot(w1_ref[...], feat_ref[...],
                preferred_element_type=jnp.float32)                  # (chn, tile_n); b1 folded in
    h = jnp.maximum(h, 0.2 * h)                                      # LeakyReLU(0.2)
    h = jnp.dot(w2_ref[...], h,
                preferred_element_type=jnp.float32) + b2_ref[...]    # (chn, tile_n)
    h = jnp.maximum(h, 0.2 * h)
    z = jnp.dot(w3_ref[...], h,
                preferred_element_type=jnp.float32) + b3_ref[...]    # (1, tile_n)

    per = (judge + 1.0) * 0.5
    # BCELoss(sigmoid(z), per), fused + numerically stable.
    softplus_negz = jnp.maximum(-z, 0.0) + jnp.log(1.0 + jnp.exp(-jnp.abs(z)))
    loss = softplus_negz + (1.0 - per) * z

    # Only the trailing tile(s) carry batch padding; full tiles skip the mask work.
    base = (c * tiles_per_split + t) * tile_n
    is_partial = base + tile_n > n_valid

    @pl.when(jnp.logical_not(is_partial))
    def _full_tile():
        acc_ref[...] += loss      # lane-wise partial sums; one cross-lane reduce at end

    @pl.when(is_partial)
    def _partial_tile():
        lane = jax.lax.broadcasted_iota(jnp.int32, (1, tile_n), 1) + base
        acc_ref[...] += jnp.where(lane < n_valid, loss, 0.0)

    @pl.when(t == tiles_per_split - 1)
    def _finalize():
        total = jnp.sum(acc_ref[...])
        out_ref[...] = jnp.full(out_ref.shape, total, dtype=jnp.float32)


def _default_num_splits():
    """2 grid splits on v7x (two TensorCores per chip), 1 on v5e/v6e."""
    try:
        kind = jax.devices()[0].device_kind.lower()
    except Exception:
        return 1
    return 2 if ("v7" in kind or "7x" in kind) else 1


def bce_ranking_loss(d0, d1, judge, params, *, tile_n=8192, num_splits=None):
    """mean(BCELoss(sigmoid(Dist2LogitLayer(d0, d1)), (judge + 1) / 2))."""
    w1, b1, w2, b2, w3, b3 = params      # PyTorch layout: W (out, in), b (out, 1)
    chn = w1.shape[0]
    n = d0.shape[0]

    # --- tile / split selection ---------------------------------------------------
    tile_n = min(int(tile_n), _round_up(n, 128))      # clamp for tiny batches
    tile_n = _round_up(max(tile_n, 128), 128)
    tile_n = min(tile_n, _MAX_TILE_N)                 # VMEM-budget ceiling (v7x safe)

    if num_splits is None:
        num_splits = _default_num_splits()
    num_splits = max(1, min(int(num_splits), -(-n // tile_n)))   # no pure-padding splits

    n_pad = _round_up(n, tile_n * num_splits)
    tiles_per_split = n_pad // (tile_n * num_splits)

    # --- input prep: one lane-dense (3, n_pad) stripe = {d0, d1, judge} ------------
    x = jnp.stack([d0.reshape(-1), d1.reshape(-1), judge.reshape(-1)],
                  axis=0).astype(jnp.float32)
    if n_pad != n:
        x = jnp.pad(x, ((0, 0), (0, n_pad - n)))

    # --- fold b1 into the padded W1 (column 5 meets the constant-1 feature row) ----
    w1p = jnp.zeros((chn, _FEATS_PAD), jnp.float32)
    w1p = w1p.at[:, :_N_FEATS].set(w1.astype(jnp.float32))
    w1p = w1p.at[:, _N_FEATS].set(b1.astype(jnp.float32).reshape(-1))

    # --- explicit VMEM budget (double-buffered input + scratch + transients) -------
    per_tile_bytes = (2 * 3 * 4 * tile_n          # stacked input, double-buffered
                      + _FEATS_PAD * 4 * tile_n   # feature scratch
                      + 4 * tile_n                # lane accumulator
                      + 2 * chn * 4 * tile_n)     # transient (chn, tile_n) activations
    vmem_limit = min(48 << 20, max(32 << 20, int(1.5 * per_tile_bytes) + (4 << 20)))

    data_spec = pl.BlockSpec((3, tile_n), lambda c, t: (0, c * tiles_per_split + t))
    const2d = lambda c, t: (0, 0)    # weights: DMA'd once, VMEM-resident

    kernel = functools.partial(_bce_ranking_kernel, n_valid=n,
                               tile_n=tile_n, tiles_per_split=tiles_per_split)

    partials = pl.pallas_call(
        kernel,
        out_shape=jax.ShapeDtypeStruct((num_splits, 8, 128), jnp.float32),
        grid=(num_splits, tiles_per_split),
        in_specs=[
            data_spec,                                       # stacked (d0, d1, judge)
            pl.BlockSpec((chn, _FEATS_PAD), const2d),        # W1 (b1 folded, zero-padded)
            pl.BlockSpec((chn, chn), const2d),               # W2
            pl.BlockSpec((chn, 1), const2d),                 # b2
            pl.BlockSpec((1, chn), const2d),                 # W3
            pl.BlockSpec((1, 1), const2d),                   # b3
        ],
        out_specs=pl.BlockSpec((1, 8, 128), lambda c, t: (c, 0, 0)),
        scratch_shapes=[pltpu.VMEM((_FEATS_PAD, tile_n), jnp.float32),
                        pltpu.VMEM((1, tile_n), jnp.float32)],
        compiler_params=pltpu.CompilerParams(
            dimension_semantics=("parallel", "arbitrary"),
            vmem_limit_bytes=vmem_limit),
    )(x, w1p, w2.astype(jnp.float32), b2.astype(jnp.float32),
      w3.astype(jnp.float32), b3.astype(jnp.float32))

    # Each split broadcast its partial sum over its (8,128) block; pick one element
    # per split, combine, and take the mean over the *true* batch size.
    return jnp.sum(partials[:, 0, 0]) / n


def init_params(key, chn_mid=CHN_MID):
    """nn.Linear default init (uniform +-1/sqrt(fan_in)), PyTorch (out,in) layout."""
    ks = jax.random.split(key, 6)

    def lin(kw, kb, fan_in, fan_out):
        bound = 1.0 / (fan_in ** 0.5)
        w = jax.random.uniform(kw, (fan_out, fan_in), jnp.float32, -bound, bound)
        b = jax.random.uniform(kb, (fan_out, 1), jnp.float32, -bound, bound)
        return w, b

    w1, b1 = lin(ks[0], ks[1], _N_FEATS, chn_mid)
    w2, b2 = lin(ks[2], ks[3], chn_mid, chn_mid)
    w3, b3 = lin(ks[4], ks[5], chn_mid, 1)
    return w1, b1, w2, b2, w3, b3


def _reference(d0, d1, judge, params):
    """Pure-JAX reference (explicit sigmoid + clamped-log BCE, as in PyTorch)."""
    w1, b1, w2, b2, w3, b3 = params
    feats = jnp.concatenate(
        [d0, d1, d0 - d1, d0 / (d1 + EPS), d1 / (d0 + EPS)], axis=1)   # (N, 5)
    h = feats @ w1.T + b1.T
    h = jnp.where(h > 0, h, 0.2 * h)
    h = h @ w2.T + b2.T
    h = jnp.where(h > 0, h, 0.2 * h)
    logit = jax.nn.sigmoid(h @ w3.T + b3.T)                            # (N, 1)
    per = (judge + 1.0) / 2.0
    loss = -(per * jnp.maximum(jnp.log(logit), -100.0)
             + (1.0 - per) * jnp.maximum(jnp.log(1.0 - logit), -100.0))
    return jnp.mean(loss)


if __name__ == "__main__":
    key = jax.random.PRNGKey(0)
    k_d0, k_d1, k_j, k_p = jax.random.split(key, 4)

    N = 1000   # deliberately not a multiple of the tile to exercise the mask path
    d0 = jax.random.uniform(k_d0, (N, 1), jnp.float32, 0.0, 1.0)
    d1 = jax.random.uniform(k_d1, (N, 1), jnp.float32, 0.0, 1.0)
    judge = jax.random.uniform(k_j, (N, 1), jnp.float32, -1.0, 1.0)

    params = init_params(k_p, CHN_MID)
    ref = _reference(d0, d1, judge, params)

    # Production defaults: large tile (clamped down for this tiny batch) and
    # generation-aware num_splits.
    loss = bce_ranking_loss(d0, d1, judge, params)
    jax.block_until_ready(loss)
    assert jnp.allclose(loss, ref, atol=1e-3, rtol=1e-3), (loss, ref)

    # Test-only small-tile, forced two-split config: exercises multi-tile lane-wise
    # accumulation, the partial-tile mask gate, and the split combine.
    loss2 = bce_ranking_loss(d0, d1, judge, params, tile_n=256, num_splits=2)
    jax.block_until_ready(loss2)
    assert jnp.allclose(loss2, ref, atol=1e-3, rtol=1e-3), (loss2, ref)

    print("KERNEL_OK")
</pallas_src>

<mosaic_0001>
module attributes {stable_mosaic.version = 11 : i64} {
  func.func @_bce_ranking_kernel(%arg0: i32, %arg1: i32, %arg2: memref<3x1024xf32, #tpu.memory_space<vmem>>, %arg3: memref<32x8xf32, #tpu.memory_space<vmem>>, %arg4: memref<32x32xf32, #tpu.memory_space<vmem>>, %arg5: memref<32x1xf32, #tpu.memory_space<vmem>>, %arg6: memref<1x32xf32, #tpu.memory_space<vmem>>, %arg7: memref<1x1xf32, #tpu.memory_space<vmem>>, %arg8: memref<1x8x128xf32, #tpu.memory_space<vmem>>, %arg9: memref<8x1024xf32, #tpu.memory_space<vmem>>, %arg10: memref<1x1024xf32, #tpu.memory_space<vmem>>) attributes {dimension_semantics = [#tpu.dimension_semantics<parallel>, #tpu.dimension_semantics<arbitrary>], iteration_bounds = array<i64: 1, 1>, scalar_prefetch = 0 : i64, scratch_operands = 2 : i64, tpu.core_type = #tpu.core_type<tc>, window_params = [{transform_indices = @transform_0, window_bounds = array<i64: 3, 1024>}, {pipeline_mode = #tpu.pipeline_mode<synchronous>, transform_indices = @transform_1, window_bounds = array<i64: 32, 8>}, {pipeline_mode = #tpu.pipeline_mode<synchronous>, transform_indices = @transform_2, window_bounds = array<i64: 32, 32>}, {pipeline_mode = #tpu.pipeline_mode<synchronous>, transform_indices = @transform_3, window_bounds = array<i64: 32, 1>}, {pipeline_mode = #tpu.pipeline_mode<synchronous>, transform_indices = @transform_4, window_bounds = array<i64: 1, 32>}, {pipeline_mode = #tpu.pipeline_mode<synchronous>, transform_indices = @transform_5, window_bounds = array<i64: 1, 1>}, {transform_indices = @transform_6, window_bounds = array<i64: 1, 8, 128>}]} {
    %c0_i32 = arith.constant 0 : i32
    %0 = arith.cmpi eq, %arg1, %c0_i32 : i32
    %1 = arith.extui %0 : i1 to i32
    %c0_i32_0 = arith.constant 0 : i32
    %2 = arith.cmpi ne, %1, %c0_i32_0 : i32
    scf.if %2 {
      %cst_38 = arith.constant 0.000000e+00 : f32
      %73 = vector.broadcast %cst_38 : f32 to vector<1x1024xf32>
      %c0_39 = arith.constant 0 : index
      %c0_40 = arith.constant 0 : index
      %74 = vector.load %arg10[%c0_39, %c0_40] : memref<1x1024xf32, #tpu.memory_space<vmem>>, vector<1x1024xf32>
      tpu.vector_store %arg10[%c0_39, %c0_40], %73 {strides = array<i32>} : memref<1x1024xf32, #tpu.memory_space<vmem>>, vector<1x1024xf32>,
      %cst_41 = arith.constant 1.000000e+00 : f32
      %75 = vector.broadcast %cst_41 : f32 to vector<1x1024xf32>
      %c5 = arith.constant 5 : index
      %c0_42 = arith.constant 0 : index
      %76 = vector.load %arg9[%c5, %c0_42] : memref<8x1024xf32, #tpu.memory_space<vmem>>, vector<1x1024xf32>
      tpu.vector_store %arg9[%c5, %c0_42], %75 {strides = array<i32>} : memref<8x1024xf32, #tpu.memory_space<vmem>>, vector<1x1024xf32>,
      %cst_43 = arith.constant 0.000000e+00 : f32
      %77 = vector.broadcast %cst_43 : f32 to vector<2x1024xf32>
      %c6 = arith.constant 6 : index
      %c0_44 = arith.constant 0 : index
      %78 = vector.load %arg9[%c6, %c0_44] : memref<8x1024xf32, #tpu.memory_space<vmem>>, vector<2x1024xf32>
      tpu.vector_store %arg9[%c6, %c0_44], %77 {strides = array<i32>} : memref<8x1024xf32, #tpu.memory_space<vmem>>, vector<2x1024xf32>,
    } else {
    }
    %c0 = arith.constant 0 : index
    %c0_1 = arith.constant 0 : index
    %3 = vector.load %arg2[%c0, %c0_1] : memref<3x1024xf32, #tpu.memory_space<vmem>>, vector<3x1024xf32>
    %4 = vector.extract_strided_slice %3 {offsets = [0, 0], sizes = [1, 1024], strides = [1, 1]} : vector<3x1024xf32> to vector<1x1024xf32>
    %5 = vector.extract_strided_slice %3 {offsets = [1, 0], sizes = [1, 1024], strides = [1, 1]} : vector<3x1024xf32> to vector<1x1024xf32>
    %6 = vector.extract_strided_slice %3 {offsets = [2, 0], sizes = [1, 1024], strides = [1, 1]} : vector<3x1024xf32> to vector<1x1024xf32>
    %cst = arith.constant 1.000000e-01 : f32
    %7 = vector.broadcast %cst : f32 to vector<1x1024xf32>
    %8 = arith.addf %5, %7 : vector<1x1024xf32>
    %9 = tpu.reciprocal %8 {approx = true} : vector<1x1024xf32> -> vector<1x1024xf32>
    %cst_2 = arith.constant 1.000000e-01 : f32
    %10 = vector.broadcast %cst_2 : f32 to vector<1x1024xf32>
    %11 = arith.addf %4, %10 : vector<1x1024xf32>
    %12 = tpu.reciprocal %11 {approx = true} : vector<1x1024xf32> -> vector<1x1024xf32>
    %c0_3 = arith.constant 0 : index
    %c0_4 = arith.constant 0 : index
    %13 = vector.load %arg9[%c0_3, %c0_4] : memref<8x1024xf32, #tpu.memory_space<vmem>>, vector<1x1024xf32>
    tpu.vector_store %arg9[%c0_3, %c0_4], %4 {strides = array<i32>} : memref<8x1024xf32, #tpu.memory_space<vmem>>, vector<1x1024xf32>,
    %c1 = arith.constant 1 : index
    %c0_5 = arith.constant 0 : index
    %14 = vector.load %arg9[%c1, %c0_5] : memref<8x1024xf32, #tpu.memory_space<vmem>>, vector<1x1024xf32>
    tpu.vector_store %arg9[%c1, %c0_5], %5 {strides = array<i32>} : memref<8x1024xf32, #tpu.memory_space<vmem>>, vector<1x1024xf32>,
    %15 = arith.subf %4, %5 : vector<1x1024xf32>
    %c2 = arith.constant 2 : index
    %c0_6 = arith.constant 0 : index
    %16 = vector.load %arg9[%c2, %c0_6] : memref<8x1024xf32, #tpu.memory_space<vmem>>, vector<1x1024xf32>
    tpu.vector_store %arg9[%c2, %c0_6], %15 {strides = array<i32>} : memref<8x1024xf32, #tpu.memory_space<vmem>>, vector<1x1024xf32>,
    %17 = arith.mulf %4, %9 : vector<1x1024xf32>
    %c3 = arith.constant 3 : index
    %c0_7 = arith.constant 0 : index
    %18 = vector.load %arg9[%c3, %c0_7] : memref<8x1024xf32, #tpu.memory_space<vmem>>, vector<1x1024xf32>
    tpu.vector_store %arg9[%c3, %c0_7], %17 {strides = array<i32>} : memref<8x1024xf32, #tpu.memory_space<vmem>>, vector<1x1024xf32>,
    %19 = arith.mulf %5, %12 : vector<1x1024xf32>
    %c4 = arith.constant 4 : index
    %c0_8 = arith.constant 0 : index
    %20 = vector.load %arg9[%c4, %c0_8] : memref<8x1024xf32, #tpu.memory_space<vmem>>, vector<1x1024xf32>
    tpu.vector_store %arg9[%c4, %c0_8], %19 {strides = array<i32>} : memref<8x1024xf32, #tpu.memory_space<vmem>>, vector<1x1024xf32>,
    %c0_9 = arith.constant 0 : index
    %c0_10 = arith.constant 0 : index
    %21 = vector.load %arg3[%c0_9, %c0_10] : memref<32x8xf32, #tpu.memory_space<vmem>>, vector<32x8xf32>
    %c0_11 = arith.constant 0 : index
    %c0_12 = arith.constant 0 : index
    %22 = vector.load %arg9[%c0_11, %c0_12] : memref<8x1024xf32, #tpu.memory_space<vmem>>, vector<8x1024xf32>
    %cst_13 = arith.constant dense<0.000000e+00> : vector<32x1024xf32>
    %23 = tpu.matmul %21, %22, %cst_13 {dimension_numbers = #tpu.dot_dimension_numbers<[1], [0], [0], [1], [0, 0, 1, 1], [], []>} : vector<32x8xf32>, vector<8x1024xf32>, vector<32x1024xf32> -> vector<32x1024xf32>
    %cst_14 = arith.constant 2.000000e-01 : f32
    %24 = vector.broadcast %cst_14 : f32 to vector<32x1024xf32>
    %25 = arith.mulf %24, %23 : vector<32x1024xf32>
    %26 = arith.maximumf %23, %25 : vector<32x1024xf32>
    %c0_15 = arith.constant 0 : index
    %c0_16 = arith.constant 0 : index
    %27 = vector.load %arg4[%c0_15, %c0_16] : memref<32x32xf32, #tpu.memory_space<vmem>>, vector<32x32xf32>
    %cst_17 = arith.constant dense<0.000000e+00> : vector<32x1024xf32>
    %28 = tpu.matmul %27, %26, %cst_17 {dimension_numbers = #tpu.dot_dimension_numbers<[1], [0], [0], [1], [0, 0, 1, 1], [], []>} : vector<32x32xf32>, vector<32x1024xf32>, vector<32x1024xf32> -> vector<32x1024xf32>
    %c0_18 = arith.constant 0 : index
    %c0_19 = arith.constant 0 : index
    %29 = vector.load %arg5[%c0_18, %c0_19] : memref<32x1xf32, #tpu.memory_space<vmem>>, vector<32x1xf32>
    %30 = vector.broadcast %29 : vector<32x1xf32> to vector<32x1024xf32>
    %31 = arith.addf %28, %30 : vector<32x1024xf32>
    %cst_20 = arith.constant 2.000000e-01 : f32
    %32 = vector.broadcast %cst_20 : f32 to vector<32x1024xf32>
    %33 = arith.mulf %32, %31 : vector<32x1024xf32>
    %34 = arith.maximumf %31, %33 : vector<32x1024xf32>
    %c0_21 = arith.constant 0 : index
    %c0_22 = arith.constant 0 : index
    %35 = vector.load %arg6[%c0_21, %c0_22] : memref<1x32xf32, #tpu.memory_space<vmem>>, vector<1x32xf32>
    %cst_23 = arith.constant dense<0.000000e+00> : vector<1x1024xf32>
    %36 = tpu.matmul %35, %34, %cst_23 {dimension_numbers = #tpu.dot_dimension_numbers<[1], [0], [0], [1], [0, 0, 1, 1], [], []>} : vector<1x32xf32>, vector<32x1024xf32>, vector<1x1024xf32> -> vector<1x1024xf32>
    %c0_24 = arith.constant 0 : index
    %c0_25 = arith.constant 0 : index
    %37 = vector.load %arg7[%c0_24, %c0_25] : memref<1x1xf32, #tpu.memory_space<vmem>>, vector<1x1xf32>
    %38 = vector.broadcast %37 : vector<1x1xf32> to vector<1x1024xf32>
    %39 = arith.addf %36, %38 : vector<1x1024xf32>
    %cst_26 = arith.constant 1.000000e+00 : f32
    %40 = vector.broadcast %cst_26 : f32 to vector<1x1024xf32>
    %41 = arith.addf %6, %40 : vector<1x1024xf32>
    %cst_27 = arith.constant 5.000000e-01 : f32
    %42 = vector.broadcast %cst_27 : f32 to vector<1x1024xf32>
    %43 = arith.mulf %41, %42 : vector<1x1024xf32>
    %cst_28 = arith.constant 0.000000e+00 : f32
    %44 = vector.broadcast %cst_28 : f32 to vector<1x1024xf32>
    %45 = arith.subf %44, %39 : vector<1x1024xf32>
    %cst_29 = arith.constant 0.000000e+00 : f32
    %46 = vector.broadcast %cst_29 : f32 to vector<1x1024xf32>
    %47 = arith.maximumf %45, %46 : vector<1x1024xf32>
    %48 = math.absf %39 : vector<1x1024xf32>
    %cst_30 = arith.constant 0.000000e+00 : f32
    %49 = vector.broadcast %cst_30 : f32 to vector<1x1024xf32>
    %50 = arith.subf %49, %48 : vector<1x1024xf32>
    %51 = math.exp %50 : vector<1x1024xf32>
    %cst_31 = arith.constant 1.000000e+00 : f32
    %52 = vector.broadcast %cst_31 : f32 to vector<1x1024xf32>
    %53 = arith.addf %52, %51 : vector<1x1024xf32>
    %54 = math.log %53 : vector<1x1024xf32>
    %55 = arith.addf %47, %54 : vector<1x1024xf32>
    %cst_32 = arith.constant 1.000000e+00 : f32
    %56 = vector.broadcast %cst_32 : f32 to vector<1x1024xf32>
    %57 = arith.subf %56, %43 : vector<1x1024xf32>
    %58 = arith.mulf %57, %39 : vector<1x1024xf32>
    %59 = arith.addf %55, %58 : vector<1x1024xf32>
    %c1_i32 = arith.constant 1 : i32
    %60 = arith.muli %arg0, %c1_i32 : i32
    %61 = arith.addi %60, %arg1 : i32
    %c1024_i32 = arith.constant 1024 : i32
    %62 = arith.muli %61, %c1024_i32 : i32
    %c1024_i32_33 = arith.constant 1024 : i32
    %63 = arith.addi %62, %c1024_i32_33 : i32
    %c1000_i32 = arith.constant 1000 : i32
    %64 = arith.cmpi sgt, %63, %c1000_i32 : i32
    %true = arith.constant true
    %65 = arith.xori %64, %true : i1
    %66 = arith.extui %65 : i1 to i32
    %c0_i32_34 = arith.constant 0 : i32
    %67 = arith.cmpi ne, %66, %c0_i32_34 : i32
    scf.if %67 {
      %c0_38 = arith.constant 0 : index
      %c0_39 = arith.constant 0 : index
      %73 = vector.load %arg10[%c0_38, %c0_39] : memref<1x1024xf32, #tpu.memory_space<vmem>>, vector<1x1024xf32>
      %74 = arith.addf %73, %59 : vector<1x1024xf32>
      %c0_40 = arith.constant 0 : index
      %c0_41 = arith.constant 0 : index
      %75 = vector.load %arg10[%c0_40, %c0_41] : memref<1x1024xf32, #tpu.memory_space<vmem>>, vector<1x1024xf32>
      tpu.vector_store %arg10[%c0_40, %c0_41], %74 {strides = array<i32>} : memref<1x1024xf32, #tpu.memory_space<vmem>>, vector<1x1024xf32>,
    } else {
    }
    %68 = arith.extui %64 : i1 to i32
    %c0_i32_35 = arith.constant 0 : i32
    %69 = arith.cmpi ne, %68, %c0_i32_35 : i32
    scf.if %69 {
      %73 = tpu.iota {dimensions = array<i32: 1>} : vector<1x1024xi32>
      %74 = vector.broadcast %62 : i32 to vector<1x1024xi32>
      %75 = arith.addi %73, %74 : vector<1x1024xi32>
      %c0_38 = arith.constant 0 : index
      %c0_39 = arith.constant 0 : index
      %76 = vector.load %arg10[%c0_38, %c0_39] : memref<1x1024xf32, #tpu.memory_space<vmem>>, vector<1x1024xf32>
      %c1000_i32_40 = arith.constant 1000 : i32
      %77 = vector.broadcast %c1000_i32_40 : i32 to vector<1x1024xi32>
      %78 = arith.cmpi slt, %75, %77 : vector<1x1024xi32>
      %cst_41 = arith.constant 0.000000e+00 : f32
      %79 = vector.broadcast %cst_41 : f32 to vector<1x1024xf32>
      %80 = arith.select %78, %59, %79 : vector<1x1024xi1>, vector<1x1024xf32>
      %81 = arith.addf %76, %80 : vector<1x1024xf32>
      %c0_42 = arith.constant 0 : index
      %c0_43 = arith.constant 0 : index
      %82 = vector.load %arg10[%c0_42, %c0_43] : memref<1x1024xf32, #tpu.memory_space<vmem>>, vector<1x1024xf32>
      tpu.vector_store %arg10[%c0_42, %c0_43], %81 {strides = array<i32>} : memref<1x1024xf32, #tpu.memory_space<vmem>>, vector<1x1024xf32>,
    } else {
    }
    %c0_i32_36 = arith.constant 0 : i32
    %70 = arith.cmpi eq, %arg1, %c0_i32_36 : i32
    %71 = arith.extui %70 : i1 to i32
    %c0_i32_37 = arith.constant 0 : i32
    %72 = arith.cmpi ne, %71, %c0_i32_37 : i32
    scf.if %72 {
      %c0_38 = arith.constant 0 : index
      %c0_39 = arith.constant 0 : index
      %73 = vector.load %arg10[%c0_38, %c0_39] : memref<1x1024xf32, #tpu.memory_space<vmem>>, vector<1x1024xf32>
      %74 = vector.shape_cast %73 : vector<1x1024xf32> to vector<1x1x1024xf32>
      %cst_40 = arith.constant dense<0.000000e+00> : vector<1xf32>
      %75 = vector.multi_reduction <add>, %74, %cst_40 [1, 2] : vector<1x1x1024xf32> to vector<1xf32>
      %76 = vector.shape_cast %75 : vector<1xf32> to vector<1x1x1xf32>
      %77 = vector.extract %76[0, 0, 0] : f32 from vector<1x1x1xf32>
      %78 = vector.broadcast %77 : f32 to vector<1x8x128xf32>
      %c0_41 = arith.constant 0 : index
      %c0_42 = arith.constant 0 : index
      %c0_43 = arith.constant 0 : index
      %79 = vector.load %arg8[%c0_41, %c0_42, %c0_43] : memref<1x8x128xf32, #tpu.memory_space<vmem>>, vector<1x8x128xf32>
      tpu.vector_store %arg8[%c0_41, %c0_42, %c0_43], %78 {strides = array<i32>} : memref<1x8x128xf32, #tpu.memory_space<vmem>>, vector<1x8x128xf32>,
    } else {
    }
    return
  }
  func.func @transform_0(%arg0: i32, %arg1: i32) -> (i32, i32) {
    %c1_i32 = arith.constant 1 : i32
    %0 = arith.muli %arg0, %c1_i32 : i32
    %1 = arith.addi %0, %arg1 : i32
    %c0_i32 = arith.constant 0 : i32
    %c0_i32_0 = arith.constant 0 : i32
    return %c0_i32, %1 : i32, i32
  }
  func.func @transform_1(%arg0: i32, %arg1: i32) -> (i32, i32) {
    %c0_i32 = arith.constant 0 : i32
    %c0_i32_0 = arith.constant 0 : i32
    %c0_i32_1 = arith.constant 0 : i32
    return %c0_i32, %c0_i32_0 : i32, i32
  }
  func.func @transform_2(%arg0: i32, %arg1: i32) -> (i32, i32) {
    %c0_i32 = arith.constant 0 : i32
    %c0_i32_0 = arith.constant 0 : i32
    %c0_i32_1 = arith.constant 0 : i32
    return %c0_i32, %c0_i32_0 : i32, i32
  }
  func.func @transform_3(%arg0: i32, %arg1: i32) -> (i32, i32) {
    %c0_i32 = arith.constant 0 : i32
    %c0_i32_0 = arith.constant 0 : i32
    %c0_i32_1 = arith.constant 0 : i32
    return %c0_i32, %c0_i32_0 : i32, i32
  }
  func.func @transform_4(%arg0: i32, %arg1: i32) -> (i32, i32) {
    %c0_i32 = arith.constant 0 : i32
    %c0_i32_0 = arith.constant 0 : i32
    %c0_i32_1 = arith.constant 0 : i32
    return %c0_i32, %c0_i32_0 : i32, i32
  }
  func.func @transform_5(%arg0: i32, %arg1: i32) -> (i32, i32) {
    %c0_i32 = arith.constant 0 : i32
    %c0_i32_0 = arith.constant 0 : i32
    %c0_i32_1 = arith.constant 0 : i32
    return %c0_i32, %c0_i32_0 : i32, i32
  }
  func.func @transform_6(%arg0: i32, %arg1: i32) -> (i32, i32, i32) {
    %c0_i32 = arith.constant 0 : i32
    %c0_i32_0 = arith.constant 0 : i32
    %c0_i32_1 = arith.constant 0 : i32
    return %arg0, %c0_i32, %c0_i32_0 : i32, i32, i32
  }
}

</mosaic_0001>

<llo_original>
// kernel: tpu_custom_call.1
$region0: #{tpu_custom_call.1}
  #allocation0 [shape = 'u32[]', space=smem, size = 0x4, offset = 0x4, fixed_abs, tag = 'smem constant byte address 0x4 - core index']
  #allocation1 [shape = 'u32[72,128]{1,0:T(1,128)}', space=vmem, size = 0x9000, scoped, tag = 'internal scratch']
  #allocation2 [shape = 'f32[8,1024]{1,0:T(8,128)}', space=vmem, size = 0x8000, scoped, tag = 'scratch operand']
  #allocation3 [shape = 'f32[1,1024]{1,0:T(1,128)}', space=vmem, size = 0x1000, scoped, tag = 'scratch operand']
  #allocation4 [shape = 'f32[1,1]{1,0:T(1,128)S(1)}', space=vmem, size = 0x200, scoped, tag = 'scoped memory for tpu_custom_call.1']
  %s0 = inlined_call_operand.vmem [shape: f32[3,1024], index: 0, kind: input, shape index: {}]
  %s1 = inlined_call_operand.vmem [shape: f32[32,8], index: 1, kind: input, shape index: {}]
  %s2 = inlined_call_operand.vmem [shape: f32[32,32], index: 2, kind: input, shape index: {}]
  %s3 = inlined_call_operand.vmem [shape: f32[32,1], index: 3, kind: input, shape index: {}]
  %s4 = inlined_call_operand.vmem [shape: f32[1,32], index: 4, kind: input, shape index: {}]
  %s5 = inlined_call_operand.<no memory space> [shape: f32[1,1], index: 5, kind: input, shape index: {}]
  %s6 = inlined_call_operand.hbm [shape: f32[1,8,128], index: 6, kind: output, shape index: {}]
  %s7 = sld [smem:[#allocation0]]
  $region50: #{tpu_custom_call.1} parent=0
    _
  %s9 = ssub.s32 1, %s7
  %s10 = scalar_select 0, %s9, %s7
  %v11 = vstv %s5
  %12 = vst [vmem:[#allocation4] sm:$0x1] %v11
  $region1: #{tpu_custom_call.1} parent=0
    #allocation5 [shape = 'u8[4096]{0}', space=vmem, size = 0x1000, scoped, tag = 'output window, operand 0, single buffered']
    #allocation6 [shape = 's32[1]{0}', space=sflag, size = 0x4, scoped, tag = 'scoped memory for tpu_custom_call.1']
    %13 = vsyncpa [#allocation6], 0
    // Predicated region
    $region2: #{tpu_custom_call.1} parent=1 // pred_check
      _
    $region3: #{tpu_custom_call.1} parent=1 // pred_check_branch
      %15 = sbr.rel (0) target = $region5
    $region4: #{tpu_custom_call.1} parent=1 // pred_region
      %s16 = sadd.s32 0, 0
      %s17 = smul.u32 8, %s16
      %p18 = scmp.lt.s32.totalorder %s17, 7
      %s19 = scalar_select %p18, %s17, 7
      %s20 = smul.addr %s19, 4
      %s21 = scalar_lea.vmem %s0, %s20
      %s22 = sadd.s32 0, 0
      %s23 = smul.u32 8, %s22
    $region5: #{tpu_custom_call.1} parent=1 // pred_fallthru
      _
    // Predicated region
    $region6: #{tpu_custom_call.1} parent=1 // pred_check
      _
    $region7: #{tpu_custom_call.1} parent=1 // pred_check_branch
      %25 = sbr.rel (0) target = $region9
    $region8: #{tpu_custom_call.1} parent=1 // pred_region
      _
    $region9: #{tpu_custom_call.1} parent=1 // pred_fallthru
      _
    // Predicated region
    $region10: #{tpu_custom_call.1} parent=1 // pred_check
      _
    $region11: #{tpu_custom_call.1} parent=1 // pred_check_branch
      %27 = sbr.rel (0) target = $region13
    $region12: #{tpu_custom_call.1} parent=1 // pred_region
      _
    $region13: #{tpu_custom_call.1} parent=1 // pred_fallthru
      _
    // Predicated region
    $region14: #{tpu_custom_call.1} parent=1 // pred_check
      _
    $region15: #{tpu_custom_call.1} parent=1 // pred_check_branch
      %29 = sbr.rel (0) target = $region17
    $region16: #{tpu_custom_call.1} parent=1 // pred_region
      _
    $region17: #{tpu_custom_call.1} parent=1 // pred_fallthru
      _
    // Predicated region
    $region18: #{tpu_custom_call.1} parent=1 // pred_check
      _
    $region19: #{tpu_custom_call.1} parent=1 // pred_check_branch
      %31 = sbr.rel (0) target = $region21
    $region20: #{tpu_custom_call.1} parent=1 // pred_region
      _
    $region21: #{tpu_custom_call.1} parent=1 // pred_fallthru
      _
    // Predicated region
    $region22: #{tpu_custom_call.1} parent=1 // pred_check
      _
    $region23: #{tpu_custom_call.1} parent=1 // pred_check_branch
      %33 = sbr.rel (0) target = $region25
    $region24: #{tpu_custom_call.1} parent=1 // pred_region
      _
    $region25: #{tpu_custom_call.1} parent=1 // pred_fallthru
      _
    %s34 = sadd.s32 0, 0
    %s35 = smul.u32 8, %s34
    %p36 = scmp.lt.s32.totalorder %s35, 7
    %s37 = scalar_select %p36, %s35, 7
    %s38 = smul.addr %s37, 4
    %s39 = scalar_lea.vmem %s0, %s38
    %s40 = sadd.s32 0, 0
    %s41 = smul.u32 8, %s40
    %p42 = scmp.lt.s32.totalorder %s41, 7
    %s43 = scalar_select %p42, %s41, 7
    %s44 = smul.addr %s43, 4
    %s45 = scalar_lea.vmem %s0, %s44
    %s46 = sadd.s32 0, 0
    %s47 = smul.u32 8, %s46
    %p48 = scmp.eq.s32.totalorder 0, 0
    // Predicated region
    $region26: #{tpu_custom_call.1} parent=1 // pred_check
      %p49 = pneg %p48
    $region27: #{tpu_custom_call.1} parent=1 // pred_check_branch
      %51 = sbr.rel (%p49) target = $region29
    $region28: #{tpu_custom_call.1} parent=1 // pred_region
      %52 = vst [vmem:[#allocation3] sm:$0xff] 0.0
      %s53 = scalar_lea.vmem [#allocation2], 5
      %54 = vst [vmem:[%s53] ss:$8 sm:$0xf] 1.0
      %55 = vst [vmem:[%s53] ss:$8 sm:$0xf0] 1.0
      %56 = vst [vmem:[#allocation2] sm:$0xc0] 0.0
      %57 = vst [vmem:[#allocation2 + $0x8] sm:$0xc0] 0.0
      %58 = vst [vmem:[#allocation2 + $0x10] sm:$0xc0] 0.0
      %59 = vst [vmem:[#allocation2 + $0x18] sm:$0xc0] 0.0
      %60 = vst [vmem:[#allocation2 + $0x20] sm:$0xc0] 0.0
      %61 = vst [vmem:[#allocation2 + $0x28] sm:$0xc0] 0.0
      %62 = vst [vmem:[#allocation2 + $0x30] sm:$0xc0] 0.0
      %63 = vst [vmem:[#allocation2 + $0x38] sm:$0xc0] 0.0
    $region29: #{tpu_custom_call.1} parent=1 // pred_fallthru
      _
    %v64 = vld [vmem:[%s45] sm:$0x77]
    %v65 = vld [vmem:[%s45 + $0x8] sm:$0x77]
    %v66 = vld [vmem:[%s45 + $0x10] sm:$0x77]
    %v67 = vld [vmem:[%s45 + $0x18] sm:$0x77]
    %v68 = vadd.f32 %v64, 0.1
    %v69 = vadd.f32 %v65, 0.1
    %v70 = vadd.f32 %v66, 0.1
    %v71 = vadd.f32 %v67, 0.1
    %v72 = vrcp.pop %v68
    %v73 = vrcp.pop %v69
    %v74 = vrcp.pop %v70
    %v75 = vrcp.pop %v71
    %v80 = vrot.slane %v64, 3
    %v81 = vrot.slane %v65, 6
    %v82 = vrot.slane %v65, 1
    %v83 = vrot.slane %v66, 4
    %v84 = vrot.slane %v66, 7
    %v85 = vrot.slane %v67, 2
    %v86 = vrot.slane %v67, 5
    %vm87 = vcmask 1040384
    %v88 = vsel %vm87, %v64, %v80
    %vm89 = vcmask 1042434
    %v90 = vsel %vm89, %v81, %v82
    %vm91 = vcmask 1041408
    %v92 = vsel %vm91, %v88, %v90
    %vm93 = vcmask 1044484
    %v94 = vsel %vm93, %v83, %v84
    %vm95 = vcmask 1046534
    %v96 = vsel %vm95, %v85, %v86
    %vm97 = vcmask 1045508
    %v98 = vsel %vm97, %v94, %v96
    %vm99 = vcmask 1043456
    %v100 = vsel %vm99, %v92, %v98
    %102 = vst [vmem:[#allocation2] ss:$8 sm:$0xf] %v100
    %103 = vst [vmem:[#allocation2] ss:$8 sm:$0xf0] %v100
    %104 = vst [vmem:[#allocation1] sm:$0xff] %v64
    %105 = vst [vmem:[#allocation1 + $0x8] sm:$0xff] %v65
    %106 = vst [vmem:[#allocation1 + $0x10] sm:$0xff] %v66
    %107 = vst [vmem:[#allocation1 + $0x18] sm:$0xff] %v67
    %s108 = scalar_lea.vmem [#allocation1], 1
    %v109 = vld [vmem:[%s108] ss:$4 sm:$0xff]
    %s111 = scalar_lea.vmem [#allocation2], 1
    %112 = vst [vmem:[%s111] ss:$8 sm:$0xf] %v109
    %113 = vst [vmem:[%s111] ss:$8 sm:$0xf0] %v109
    %v114 = vrot.slane %v64, 5
    %v115 = vrot.slane %v114, 4
    %v116 = vrot.slane %v65, 5
    %v117 = vrot.slane %v116, 4
    %v118 = vrot.slane %v66, 5
    %v119 = vrot.slane %v118, 4
    %v120 = vrot.slane %v86, 4
    %v125 = vsub.f32 %v64, %v115
    %v126 = vsub.f32 %v65, %v117
    %v127 = vsub.f32 %v66, %v119
    %v128 = vsub.f32 %v67, %v120
    %v133 = vrot.slane %v125, 3
    %v134 = vrot.slane %v126, 6
    %v135 = vrot.slane %v126, 1
    %v136 = vrot.slane %v127, 4
    %v137 = vrot.slane %v127, 7
    %v138 = vrot.slane %v128, 2
    %v139 = vrot.slane %v128, 5
    %v140 = vsel %vm87, %v125, %v133
    %v141 = vsel %vm89, %v134, %v135
    %v142 = vsel %vm91, %v140, %v141
    %v143 = vsel %vm93, %v136, %v137
    %v144 = vsel %vm95, %v138, %v139
    %v145 = vsel %vm97, %v143, %v144
    %v146 = vsel %vm99, %v142, %v145
    %s148 = scalar_lea.vmem [#allocation2], 2
    %149 = vst [vmem:[%s148] ss:$8 sm:$0xf] %v146
    %150 = vst [vmem:[%s148] ss:$8 sm:$0xf0] %v146
    %v155 = vrot.slane %v72, 5
    %v156 = vrot.slane %v155, 4
    %v157 = vrot.slane %v73, 5
    %v158 = vrot.slane %v157, 4
    %v159 = vrot.slane %v74, 5
    %v160 = vrot.slane %v159, 4
    %v161 = vrot.slane %v75, 5
    %v162 = vrot.slane %v161, 4
    %v167 = vmul.f32 %v64, %v156
    %v168 = vmul.f32 %v65, %v158
    %v169 = vmul.f32 %v66, %v160
    %v170 = vmul.f32 %v67, %v162
    %v175 = vrot.slane %v167, 3
    %v176 = vrot.slane %v168, 6
    %v177 = vrot.slane %v168, 1
    %v178 = vrot.slane %v169, 4
    %v179 = vrot.slane %v169, 7
    %v180 = vrot.slane %v170, 2
    %v181 = vrot.slane %v170, 5
    %v182 = vsel %vm87, %v167, %v175
    %v183 = vsel %vm89, %v176, %v177
    %v184 = vsel %vm91, %v182, %v183
    %v185 = vsel %vm93, %v178, %v179
    %v186 = vsel %vm95, %v180, %v181
    %v187 = vsel %vm97, %v185, %v186
    %v188 = vsel %vm99, %v184, %v187
    %s190 = scalar_lea.vmem [#allocation2], 3
    %191 = vst [vmem:[%s190] ss:$8 sm:$0xf] %v188
    %192 = vst [vmem:[%s190] ss:$8 sm:$0xf0] %v188
    %v193 = vrot.slane %v72, 7
    %v194 = vrot.slane %v73, 7
    %v195 = vrot.slane %v74, 7
    %v196 = vrot.slane %v75, 7
    %v201 = vmul.f32 %v64, %v193
    %v202 = vmul.f32 %v65, %v194
    %v203 = vmul.f32 %v66, %v195
    %v204 = vmul.f32 %v67, %v196
    %209 = vst [vmem:[#allocation1] sm:$0xff] %v201
    %210 = vst [vmem:[#allocation1 + $0x8] sm:$0xff] %v202
    %211 = vst [vmem:[#allocation1 + $0x10] sm:$0xff] %v203
    %212 = vst [vmem:[#allocation1 + $0x18] sm:$0xff] %v204
    %s213 = scalar_lea.vmem [#allocation1], 1
    %v214 = vld [vmem:[%s213] ss:$4 sm:$0xff]
    %s216 = scalar_lea.vmem [#allocation2], 4
    %217 = vst [vmem:[%s216] ss:$8 sm:$0xf] %v214
    %218 = vst [vmem:[%s216] ss:$8 sm:$0xf0] %v214
    %v219 = vld [vmem:[%s1] sm:$0xff]
    %v220 = vld [vmem:[%s1 + $0x8] sm:$0xff]
    %v221 = vld [vmem:[%s1 + $0x10] sm:$0xff]
    %v222 = vld [vmem:[%s1 + $0x18] sm:$0xff]
    %v223 = vld [vmem:[#allocation2] sm:$0xff]
    %v224 = vld [vmem:[#allocation2 + $0x8] sm:$0xff]
    %v225 = vld [vmem:[#allocation2 + $0x10] sm:$0xff]
    %v226 = vld [vmem:[#allocation2 + $0x18] sm:$0xff]
    %v227 = vld [vmem:[#allocation2 + $0x20] sm:$0xff]
    %v228 = vld [vmem:[#allocation2 + $0x28] sm:$0xff]
    %v229 = vld [vmem:[#allocation2 + $0x30] sm:$0xff]
    %v230 = vld [vmem:[#allocation2 + $0x38] sm:$0xff]
    %vm231 = vcmask 64512
    %v233 = vsel %vm231, %v219, 0
    %v236 = vsel %vm231, %v220, 0
    %v239 = vsel %vm231, %v221, 0
    %v242 = vsel %vm231, %v222, 0
    %244 = vmatpush.msra.mxu0 0.0
    %245 = vmatpush.msra.mxu0 0.0
    %246 = vmatpush.msra.mxu0 0.0
    %247 = vmatpush.msra.mxu0 0.0
    %248 = vmatpush.msra.mxu0 0.0
    %249 = vmatpush.msra.mxu0 0.0
    %250 = vmatpush.msra.mxu0 0.0
    %251 = vmatpush.msra.mxu0 0.0
    %252 = vmatpush.msra.mxu0 0.0
    %253 = vmatpush.msra.mxu0 0.0
    %254 = vmatpush.msra.mxu0 0.0
    %255 = vmatpush.msra.mxu0 0.0
    %256 = vmatpush.msra.mxu0 0.0
    %257 = vmatpush.msra.mxu0 0.0
    %258 = vmatpush.msra.mxu0 0.0
    %259 = vmatpush.msra.mxu0 %v223
    %260 = vmatmul.f32.gmra.mxu0 %v233
    %v261 = vpop.f32.mrf.mxu0
    %v262 = vadd.f32 0.0, %v261
    %263 = vmatmul.f32.gmra.mxu0 %v236
    %v264 = vpop.f32.mrf.mxu0
    %v265 = vadd.f32 0.0, %v264
    %266 = vmatmul.f32.gmra.mxu0 %v239
    %v267 = vpop.f32.mrf.mxu0
    %v268 = vadd.f32 0.0, %v267
    %269 = vmatmul.f32.gmra.mxu0 %v242
    %v270 = vpop.f32.mrf.mxu0
    %v271 = vadd.f32 0.0, %v270
    %272 = vdwg.mxu0
    %273 = vmatpush.msra.mxu0 0.0
    %274 = vmatpush.msra.mxu0 0.0
    %275 = vmatpush.msra.mxu0 0.0
    %276 = vmatpush.msra.mxu0 0.0
    %277 = vmatpush.msra.mxu0 0.0
    %278 = vmatpush.msra.mxu0 0.0
    %279 = vmatpush.msra.mxu0 0.0
    %280 = vmatpush.msra.mxu0 0.0
    %281 = vmatpush.msra.mxu0 0.0
    %282 = vmatpush.msra.mxu0 0.0
    %283 = vmatpush.msra.mxu0 0.0
    %284 = vmatpush.msra.mxu0 0.0
    %285 = vmatpush.msra.mxu0 0.0
    %286 = vmatpush.msra.mxu0 0.0
    %287 = vmatpush.msra.mxu0 0.0
    %288 = vmatpush.msra.mxu0 %v224
    %289 = vmatmul.f32.gmra.mxu0 %v233
    %v290 = vpop.f32.mrf.mxu0
    %v291 = vadd.f32 0.0, %v290
    %292 = vmatmul.f32.gmra.mxu0 %v236
    %v293 = vpop.f32.mrf.mxu0
    %v294 = vadd.f32 0.0, %v293
    %295 = vmatmul.f32.gmra.mxu0 %v239
    %v296 = vpop.f32.mrf.mxu0
    %v297 = vadd.f32 0.0, %v296
    %298 = vmatmul.f32.gmra.mxu0 %v242
    %v299 = vpop.f32.mrf.mxu0
    %v300 = vadd.f32 0.0, %v299
    %301 = vdwg.mxu0
    %302 = vmatpush.msra.mxu0 0.0
    %303 = vmatpush.msra.mxu0 0.0
    %304 = vmatpush.msra.mxu0 0.0
    %305 = vmatpush.msra.mxu0 0.0
    %306 = vmatpush.msra.mxu0 0.0
    %307 = vmatpush.msra.mxu0 0.0
    %308 = vmatpush.msra.mxu0 0.0
    %309 = vmatpush.msra.mxu0 0.0
    %310 = vmatpush.msra.mxu0 0.0
    %311 = vmatpush.msra.mxu0 0.0
    %312 = vmatpush.msra.mxu0 0.0
    %313 = vmatpush.msra.mxu0 0.0
    %314 = vmatpush.msra.mxu0 0.0
    %315 = vmatpush.msra.mxu0 0.0
    %316 = vmatpush.msra.mxu0 0.0
    %317 = vmatpush.msra.mxu0 %v225
    %318 = vmatmul.f32.gmra.mxu0 %v233
    %v319 = vpop.f32.mrf.mxu0
    %v320 = vadd.f32 0.0, %v319
    %321 = vmatmul.f32.gmra.mxu0 %v236
    %v322 = vpop.f32.mrf.mxu0
    %v323 = vadd.f32 0.0, %v322
    %324 = vmatmul.f32.gmra.mxu0 %v239
    %v325 = vpop.f32.mrf.mxu0
    %v326 = vadd.f32 0.0, %v325
    %327 = vmatmul.f32.gmra.mxu0 %v242
    %v328 = vpop.f32.mrf.mxu0
    %v329 = vadd.f32 0.0, %v328
    %330 = vdwg.mxu0
    %331 = vmatpush.msra.mxu0 0.0
    %332 = vmatpush.msra.mxu0 0.0
    %333 = vmatpush.msra.mxu0 0.0
    %334 = vmatpush.msra.mxu0 0.0
    %335 = vmatpush.msra.mxu0 0.0
    %336 = vmatpush.msra.mxu0 0.0
    %337 = vmatpush.msra.mxu0 0.0
    %338 = vmatpush.msra.mxu0 0.0
    %339 = vmatpush.msra.mxu0 0.0
    %340 = vmatpush.msra.mxu0 0.0
    %341 = vmatpush.msra.mxu0 0.0
    %342 = vmatpush.msra.mxu0 0.0
    %343 = vmatpush.msra.mxu0 0.0
    %344 = vmatpush.msra.mxu0 0.0
    %345 = vmatpush.msra.mxu0 0.0
    %346 = vmatpush.msra.mxu0 %v226
    %347 = vmatmul.f32.gmra.mxu0 %v233
    %v348 = vpop.f32.mrf.mxu0
    %v349 = vadd.f32 0.0, %v348
    %350 = vmatmul.f32.gmra.mxu0 %v236
    %v351 = vpop.f32.mrf.mxu0
    %v352 = vadd.f32 0.0, %v351
    %353 = vmatmul.f32.gmra.mxu0 %v239
    %v354 = vpop.f32.mrf.mxu0
    %v355 = vadd.f32 0.0, %v354
    %356 = vmatmul.f32.gmra.mxu0 %v242
    %v357 = vpop.f32.mrf.mxu0
    %v358 = vadd.f32 0.0, %v357
    %359 = vdwg.mxu0
    %360 = vmatpush.msra.mxu0 0.0
    %361 = vmatpush.msra.mxu0 0.0
    %362 = vmatpush.msra.mxu0 0.0
    %363 = vmatpush.msra.mxu0 0.0
    %364 = vmatpush.msra.mxu0 0.0
    %365 = vmatpush.msra.mxu0 0.0
    %366 = vmatpush.msra.mxu0 0.0
    %367 = vmatpush.msra.mxu0 0.0
    %368 = vmatpush.msra.mxu0 0.0
    %369 = vmatpush.msra.mxu0 0.0
    %370 = vmatpush.msra.mxu0 0.0
    %371 = vmatpush.msra.mxu0 0.0
    %372 = vmatpush.msra.mxu0 0.0
    %373 = vmatpush.msra.mxu0 0.0
    %374 = vmatpush.msra.mxu0 0.0
    %375 = vmatpush.msra.mxu0 %v227
    %376 = vmatmul.f32.gmra.mxu0 %v233
    %v377 = vpop.f32.mrf.mxu0
    %v378 = vadd.f32 0.0, %v377
    %379 = vmatmul.f32.gmra.mxu0 %v236
    %v380 = vpop.f32.mrf.mxu0
    %v381 = vadd.f32 0.0, %v380
    %382 = vmatmul.f32.gmra.mxu0 %v239
    %v383 = vpop.f32.mrf.mxu0
    %v384 = vadd.f32 0.0, %v383
    %385 = vmatmul.f32.gmra.mxu0 %v242
    %v386 = vpop.f32.mrf.mxu0
    %v387 = vadd.f32 0.0, %v386
    %388 = vdwg.mxu0
    %389 = vmatpush.msra.mxu0 0.0
    %390 = vmatpush.msra.mxu0 0.0
    %391 = vmatpush.msra.mxu0 0.0
    %392 = vmatpush.msra.mxu0 0.0
    %393 = vmatpush.msra.mxu0 0.0
    %394 = vmatpush.msra.mxu0 0.0
    %395 = vmatpush.msra.mxu0 0.0
    %396 = vmatpush.msra.mxu0 0.0
    %397 = vmatpush.msra.mxu0 0.0
    %398 = vmatpush.msra.mxu0 0.0
    %399 = vmatpush.msra.mxu0 0.0
    %400 = vmatpush.msra.mxu0 0.0
    %401 = vmatpush.msra.mxu0 0.0
    %402 = vmatpush.msra.mxu0 0.0
    %403 = vmatpush.msra.mxu0 0.0
    %404 = vmatpush.msra.mxu0 %v228
    %405 = vmatmul.f32.gmra.mxu0 %v233
    %v406 = vpop.f32.mrf.mxu0
    %v407 = vadd.f32 0.0, %v406
    %408 = vmatmul.f32.gmra.mxu0 %v236
    %v409 = vpop.f32.mrf.mxu0
    %v410 = vadd.f32 0.0, %v409
    %411 = vmatmul.f32.gmra.mxu0 %v239
    %v412 = vpop.f32.mrf.mxu0
    %v413 = vadd.f32 0.0, %v412
    %414 = vmatmul.f32.gmra.mxu0 %v242
    %v415 = vpop.f32.mrf.mxu0
    %v416 = vadd.f32 0.0, %v415
    %417 = vdwg.mxu0
    %418 = vmatpush.msra.mxu0 0.0
    %419 = vmatpush.msra.mxu0 0.0
    %420 = vmatpush.msra.mxu0 0.0
    %421 = vmatpush.msra.mxu0 0.0
    %422 = vmatpush.msra.mxu0 0.0
    %423 = vmatpush.msra.mxu0 0.0
    %424 = vmatpush.msra.mxu0 0.0
    %425 = vmatpush.msra.mxu0 0.0
    %426 = vmatpush.msra.mxu0 0.0
    %427 = vmatpush.msra.mxu0 0.0
    %428 = vmatpush.msra.mxu0 0.0
    %429 = vmatpush.msra.mxu0 0.0
    %430 = vmatpush.msra.mxu0 0.0
    %431 = vmatpush.msra.mxu0 0.0
    %432 = vmatpush.msra.mxu0 0.0
    %433 = vmatpush.msra.mxu0 %v229
    %434 = vmatmul.f32.gmra.mxu0 %v233
    %v435 = vpop.f32.mrf.mxu0
    %v436 = vadd.f32 0.0, %v435
    %437 = vmatmul.f32.gmra.mxu0 %v236
    %v438 = vpop.f32.mrf.mxu0
    %v439 = vadd.f32 0.0, %v438
    %440 = vmatmul.f32.gmra.mxu0 %v239
    %v441 = vpop.f32.mrf.mxu0
    %v442 = vadd.f32 0.0, %v441
    %443 = vmatmul.f32.gmra.mxu0 %v242
    %v444 = vpop.f32.mrf.mxu0
    %v445 = vadd.f32 0.0, %v444
    %446 = vdwg.mxu0
    %447 = vmatpush.msra.mxu0 0.0
    %448 = vmatpush.msra.mxu0 0.0
    %449 = vmatpush.msra.mxu0 0.0
    %450 = vmatpush.msra.mxu0 0.0
    %451 = vmatpush.msra.mxu0 0.0
    %452 = vmatpush.msra.mxu0 0.0
    %453 = vmatpush.msra.mxu0 0.0
    %454 = vmatpush.msra.mxu0 0.0
    %455 = vmatpush.msra.mxu0 0.0
    %456 = vmatpush.msra.mxu0 0.0
    %457 = vmatpush.msra.mxu0 0.0
    %458 = vmatpush.msra.mxu0 0.0
    %459 = vmatpush.msra.mxu0 0.0
    %460 = vmatpush.msra.mxu0 0.0
    %461 = vmatpush.msra.mxu0 0.0
    %462 = vmatpush.msra.mxu0 %v230
    %463 = vmatmul.f32.gmra.mxu0 %v233
    %v464 = vpop.f32.mrf.mxu0
    %v465 = vadd.f32 0.0, %v464
    %466 = vmatmul.f32.gmra.mxu0 %v236
    %v467 = vpop.f32.mrf.mxu0
    %v468 = vadd.f32 0.0, %v467
    %469 = vmatmul.f32.gmra.mxu0 %v239
    %v470 = vpop.f32.mrf.mxu0
    %v471 = vadd.f32 0.0, %v470
    %472 = vmatmul.f32.gmra.mxu0 %v242
    %v473 = vpop.f32.mrf.mxu0
    %v474 = vadd.f32 0.0, %v473
    %475 = vdwg.mxu0
    %v476 = vmul.f32 %v262, 0.2
    %v477 = vmul.f32 %v291, 0.2
    %v478 = vmul.f32 %v320, 0.2
    %v479 = vmul.f32 %v349, 0.2
    %v480 = vmul.f32 %v378, 0.2
    %v481 = vmul.f32 %v407, 0.2
    %v482 = vmul.f32 %v436, 0.2
    %v483 = vmul.f32 %v465, 0.2
    %v484 = vmul.f32 %v265, 0.2
    %v485 = vmul.f32 %v294, 0.2
    %v486 = vmul.f32 %v323, 0.2
    %v487 = vmul.f32 %v352, 0.2
    %v488 = vmul.f32 %v381, 0.2
    %v489 = vmul.f32 %v410, 0.2
    %v490 = vmul.f32 %v439, 0.2
    %v491 = vmul.f32 %v468, 0.2
    %v492 = vmul.f32 %v268, 0.2
    %v493 = vmul.f32 %v297, 0.2
    %v494 = vmul.f32 %v326, 0.2
    %v495 = vmul.f32 %v355, 0.2
    %v496 = vmul.f32 %v384, 0.2
    %v497 = vmul.f32 %v413, 0.2
    %v498 = vmul.f32 %v442, 0.2
    %v499 = vmul.f32 %v471, 0.2
    %v500 = vmul.f32 %v271, 0.2
    %v501 = vmul.f32 %v300, 0.2
    %v502 = vmul.f32 %v329, 0.2
    %v503 = vmul.f32 %v358, 0.2
    %v504 = vmul.f32 %v387, 0.2
    %v505 = vmul.f32 %v416, 0.2
    %v506 = vmul.f32 %v445, 0.2
    %v507 = vmul.f32 %v474, 0.2
    %v508 = vmax.f32 %v262, %v476
    %v509 = vmax.f32 %v291, %v477
    %v510 = vmax.f32 %v320, %v478
    %v511 = vmax.f32 %v349, %v479
    %v512 = vmax.f32 %v378, %v480
    %v513 = vmax.f32 %v407, %v481
    %v514 = vmax.f32 %v436, %v482
    %v515 = vmax.f32 %v465, %v483
    %v516 = vmax.f32 %v265, %v484
    %v517 = vmax.f32 %v294, %v485
    %v518 = vmax.f32 %v323, %v486
    %v519 = vmax.f32 %v352, %v487
    %v520 = vmax.f32 %v381, %v488
    %v521 = vmax.f32 %v410, %v489
    %v522 = vmax.f32 %v439, %v490
    %v523 = vmax.f32 %v468, %v491
    %v524 = vmax.f32 %v268, %v492
    %v525 = vmax.f32 %v297, %v493
    %v526 = vmax.f32 %v326, %v494
    %v527 = vmax.f32 %v355, %v495
    %v528 = vmax.f32 %v384, %v496
    %v529 = vmax.f32 %v413, %v497
    %v530 = vmax.f32 %v442, %v498
    %v531 = vmax.f32 %v471, %v499
    %v532 = vmax.f32 %v271, %v500
    %v533 = vmax.f32 %v300, %v501
    %v534 = vmax.f32 %v329, %v502
    %v535 = vmax.f32 %v358, %v503
    %v536 = vmax.f32 %v387, %v504
    %v537 = vmax.f32 %v416, %v505
    %v538 = vmax.f32 %v445, %v506
    %v539 = vmax.f32 %v474, %v507
    %v540 = vld [vmem:[%s2] sm:$0xff]
    %v541 = vld [vmem:[%s2 + $0x8] sm:$0xff]
    %v542 = vld [vmem:[%s2 + $0x10] sm:$0xff]
    %v543 = vld [vmem:[%s2 + $0x18] sm:$0xff]
    %v544 = vld [vmem:[%s3] sm:$0xff]
    %v545 = vld [vmem:[%s3 + $0x8] sm:$0xff]
    %v546 = vld [vmem:[%s3 + $0x10] sm:$0xff]
    %v547 = vld [vmem:[%s3 + $0x18] sm:$0xff]
    %549 = vset.pattern.permute.xlu0 0
    %550 = vperm.xlu0 %549, %v544
    %v551 = vpop.permute.xlu0 %550
    %554 = vset.pattern.permute.xlu0 0
    %555 = vperm.xlu0 %554, %v545
    %v556 = vpop.permute.xlu0 %555
    %559 = vset.pattern.permute.xlu0 0
    %560 = vperm.xlu0 %559, %v546
    %v561 = vpop.permute.xlu0 %560
    %564 = vset.pattern.permute.xlu0 0
    %565 = vperm.xlu0 %564, %v547
    %v566 = vpop.permute.xlu0 %565
    %vm568 = vcmask 261120
    %v570 = vsel %vm568, %v540, 0
    %v573 = vsel %vm568, %v541, 0
    %v576 = vsel %vm568, %v542, 0
    %v579 = vsel %vm568, %v543, 0
    %581 = vmatpush.msra.mxu0 0.0
    %582 = vmatpush.msra.mxu0 0.0
    %583 = vmatpush.msra.mxu0 0.0
    %584 = vmatpush.msra.mxu0 0.0
    %585 = vmatpush.msra.mxu0 0.0
    %586 = vmatpush.msra.mxu0 0.0
    %587 = vmatpush.msra.mxu0 0.0
    %588 = vmatpush.msra.mxu0 0.0
    %589 = vmatpush.msra.mxu0 0.0
    %590 = vmatpush.msra.mxu0 0.0
    %591 = vmatpush.msra.mxu0 0.0
    %592 = vmatpush.msra.mxu0 0.0
    %593 = vmatpush.msra.mxu0 %v532
    %594 = vmatpush.msra.mxu0 %v524
    %595 = vmatpush.msra.mxu0 %v516
    %596 = vmatpush.msra.mxu0 %v508
    %597 = vmatmul.f32.gmra.mxu0 %v570
    %v598 = vpop.f32.mrf.mxu0
    %v599 = vadd.f32 %v551, %v598
    %600 = vmatmul.f32.gmra.mxu0 %v573
    %v601 = vpop.f32.mrf.mxu0
    %v602 = vadd.f32 %v556, %v601
    %603 = vmatmul.f32.gmra.mxu0 %v576
    %v604 = vpop.f32.mrf.mxu0
    %v605 = vadd.f32 %v561, %v604
    %606 = vmatmul.f32.gmra.mxu0 %v579
    %v607 = vpop.f32.mrf.mxu0
    %v608 = vadd.f32 %v566, %v607
    %609 = vdwg.mxu0
    %610 = vmatpush.msra.mxu0 0.0
    %611 = vmatpush.msra.mxu0 0.0
    %612 = vmatpush.msra.mxu0 0.0
    %613 = vmatpush.msra.mxu0 0.0
    %614 = vmatpush.msra.mxu0 0.0
    %615 = vmatpush.msra.mxu0 0.0
    %616 = vmatpush.msra.mxu0 0.0
    %617 = vmatpush.msra.mxu0 0.0
    %618 = vmatpush.msra.mxu0 0.0
    %619 = vmatpush.msra.mxu0 0.0
    %620 = vmatpush.msra.mxu0 0.0
    %621 = vmatpush.msra.mxu0 0.0
    %622 = vmatpush.msra.mxu0 %v533
    %623 = vmatpush.msra.mxu0 %v525
    %624 = vmatpush.msra.mxu0 %v517
    %625 = vmatpush.msra.mxu0 %v509
    %626 = vmatmul.f32.gmra.mxu0 %v570
    %v627 = vpop.f32.mrf.mxu0
    %v628 = vadd.f32 %v551, %v627
    %629 = vmatmul.f32.gmra.mxu0 %v573
    %v630 = vpop.f32.mrf.mxu0
    %v631 = vadd.f32 %v556, %v630
    %632 = vmatmul.f32.gmra.mxu0 %v576
    %v633 = vpop.f32.mrf.mxu0
    %v634 = vadd.f32 %v561, %v633
    %635 = vmatmul.f32.gmra.mxu0 %v579
    %v636 = vpop.f32.mrf.mxu0
    %v637 = vadd.f32 %v566, %v636
    %638 = vdwg.mxu0
    %639 = vmatpush.msra.mxu0 0.0
    %640 = vmatpush.msra.mxu0 0.0
    %641 = vmatpush.msra.mxu0 0.0
    %642 = vmatpush.msra.mxu0 0.0
    %643 = vmatpush.msra.mxu0 0.0
    %644 = vmatpush.msra.mxu0 0.0
    %645 = vmatpush.msra.mxu0 0.0
    %646 = vmatpush.msra.mxu0 0.0
    %647 = vmatpush.msra.mxu0 0.0
    %648 = vmatpush.msra.mxu0 0.0
    %649 = vmatpush.msra.mxu0 0.0
    %650 = vmatpush.msra.mxu0 0.0
    %651 = vmatpush.msra.mxu0 %v534
    %652 = vmatpush.msra.mxu0 %v526
    %653 = vmatpush.msra.mxu0 %v518
    %654 = vmatpush.msra.mxu0 %v510
    %655 = vmatmul.f32.gmra.mxu0 %v570
    %v656 = vpop.f32.mrf.mxu0
    %v657 = vadd.f32 %v551, %v656
    %658 = vmatmul.f32.gmra.mxu0 %v573
    %v659 = vpop.f32.mrf.mxu0
    %v660 = vadd.f32 %v556, %v659
    %661 = vmatmul.f32.gmra.mxu0 %v576
    %v662 = vpop.f32.mrf.mxu0
    %v663 = vadd.f32 %v561, %v662
    %664 = vmatmul.f32.gmra.mxu0 %v579
    %v665 = vpop.f32.mrf.mxu0
    %v666 = vadd.f32 %v566, %v665
    %667 = vdwg.mxu0
    %668 = vmatpush.msra.mxu0 0.0
    %669 = vmatpush.msra.mxu0 0.0
    %670 = vmatpush.msra.mxu0 0.0
    %671 = vmatpush.msra.mxu0 0.0
    %672 = vmatpush.msra.mxu0 0.0
    %673 = vmatpush.msra.mxu0 0.0
    %674 = vmatpush.msra.mxu0 0.0
    %675 = vmatpush.msra.mxu0 0.0
    %676 = vmatpush.msra.mxu0 0.0
    %677 = vmatpush.msra.mxu0 0.0
    %678 = vmatpush.msra.mxu0 0.0
    %679 = vmatpush.msra.mxu0 0.0
    %680 = vmatpush.msra.mxu0 %v535
    %681 = vmatpush.msra.mxu0 %v527
    %682 = vmatpush.msra.mxu0 %v519
    %683 = vmatpush.msra.mxu0 %v511
    %684 = vmatmul.f32.gmra.mxu0 %v570
    %v685 = vpop.f32.mrf.mxu0
    %v686 = vadd.f32 %v551, %v685
    %687 = vmatmul.f32.gmra.mxu0 %v573
    %v688 = vpop.f32.mrf.mxu0
    %v689 = vadd.f32 %v556, %v688
    %690 = vmatmul.f32.gmra.mxu0 %v576
    %v691 = vpop.f32.mrf.mxu0
    %v692 = vadd.f32 %v561, %v691
    %693 = vmatmul.f32.gmra.mxu0 %v579
    %v694 = vpop.f32.mrf.mxu0
    %v695 = vadd.f32 %v566, %v694
    %696 = vdwg.mxu0
    %697 = vmatpush.msra.mxu0 0.0
    %698 = vmatpush.msra.mxu0 0.0
    %699 = vmatpush.msra.mxu0 0.0
    %700 = vmatpush.msra.mxu0 0.0
    %701 = vmatpush.msra.mxu0 0.0
    %702 = vmatpush.msra.mxu0 0.0
    %703 = vmatpush.msra.mxu0 0.0
    %704 = vmatpush.msra.mxu0 0.0
    %705 = vmatpush.msra.mxu0 0.0
    %706 = vmatpush.msra.mxu0 0.0
    %707 = vmatpush.msra.mxu0 0.0
    %708 = vmatpush.msra.mxu0 0.0
    %709 = vmatpush.msra.mxu0 %v536
    %710 = vmatpush.msra.mxu0 %v528
    %711 = vmatpush.msra.mxu0 %v520
    %712 = vmatpush.msra.mxu0 %v512
    %713 = vmatmul.f32.gmra.mxu0 %v570
    %v714 = vpop.f32.mrf.mxu0
    %v715 = vadd.f32 %v551, %v714
    %716 = vmatmul.f32.gmra.mxu0 %v573
    %v717 = vpop.f32.mrf.mxu0
    %v718 = vadd.f32 %v556, %v717
    %719 = vmatmul.f32.gmra.mxu0 %v576
    %v720 = vpop.f32.mrf.mxu0
    %v721 = vadd.f32 %v561, %v720
    %722 = vmatmul.f32.gmra.mxu0 %v579
    %v723 = vpop.f32.mrf.mxu0
    %v724 = vadd.f32 %v566, %v723
    %725 = vdwg.mxu0
    %726 = vmatpush.msra.mxu0 0.0
    %727 = vmatpush.msra.mxu0 0.0
    %728 = vmatpush.msra.mxu0 0.0
    %729 = vmatpush.msra.mxu0 0.0
    %730 = vmatpush.msra.mxu0 0.0
    %731 = vmatpush.msra.mxu0 0.0
    %732 = vmatpush.msra.mxu0 0.0
    %733 = vmatpush.msra.mxu0 0.0
    %734 = vmatpush.msra.mxu0 0.0
    %735 = vmatpush.msra.mxu0 0.0
    %736 = vmatpush.msra.mxu0 0.0
    %737 = vmatpush.msra.mxu0 0.0
    %738 = vmatpush.msra.mxu0 %v537
    %739 = vmatpush.msra.mxu0 %v529
    %740 = vmatpush.msra.mxu0 %v521
    %741 = vmatpush.msra.mxu0 %v513
    %742 = vmatmul.f32.gmra.mxu0 %v570
    %v743 = vpop.f32.mrf.mxu0
    %v744 = vadd.f32 %v551, %v743
    %745 = vmatmul.f32.gmra.mxu0 %v573
    %v746 = vpop.f32.mrf.mxu0
    %v747 = vadd.f32 %v556, %v746
    %748 = vmatmul.f32.gmra.mxu0 %v576
    %v749 = vpop.f32.mrf.mxu0
    %v750 = vadd.f32 %v561, %v749
    %751 = vmatmul.f32.gmra.mxu0 %v579
    %v752 = vpop.f32.mrf.mxu0
    %v753 = vadd.f32 %v566, %v752
    %754 = vdwg.mxu0
    %755 = vmatpush.msra.mxu0 0.0
    %756 = vmatpush.msra.mxu0 0.0
    %757 = vmatpush.msra.mxu0 0.0
    %758 = vmatpush.msra.mxu0 0.0
    %759 = vmatpush.msra.mxu0 0.0
    %760 = vmatpush.msra.mxu0 0.0
    %761 = vmatpush.msra.mxu0 0.0
    %762 = vmatpush.msra.mxu0 0.0
    %763 = vmatpush.msra.mxu0 0.0
    %764 = vmatpush.msra.mxu0 0.0
    %765 = vmatpush.msra.mxu0 0.0
    %766 = vmatpush.msra.mxu0 0.0
    %767 = vmatpush.msra.mxu0 %v538
    %768 = vmatpush.msra.mxu0 %v530
    %769 = vmatpush.msra.mxu0 %v522
    %770 = vmatpush.msra.mxu0 %v514
    %771 = vmatmul.f32.gmra.mxu0 %v570
    %v772 = vpop.f32.mrf.mxu0
    %v773 = vadd.f32 %v551, %v772
    %774 = vmatmul.f32.gmra.mxu0 %v573
    %v775 = vpop.f32.mrf.mxu0
    %v776 = vadd.f32 %v556, %v775
    %777 = vmatmul.f32.gmra.mxu0 %v576
    %v778 = vpop.f32.mrf.mxu0
    %v779 = vadd.f32 %v561, %v778
    %780 = vmatmul.f32.gmra.mxu0 %v579
    %v781 = vpop.f32.mrf.mxu0
    %v782 = vadd.f32 %v566, %v781
    %783 = vdwg.mxu0
    %784 = vmatpush.msra.mxu0 0.0
    %785 = vmatpush.msra.mxu0 0.0
    %786 = vmatpush.msra.mxu0 0.0
    %787 = vmatpush.msra.mxu0 0.0
    %788 = vmatpush.msra.mxu0 0.0
    %789 = vmatpush.msra.mxu0 0.0
    %790 = vmatpush.msra.mxu0 0.0
    %791 = vmatpush.msra.mxu0 0.0
    %792 = vmatpush.msra.mxu0 0.0
    %793 = vmatpush.msra.mxu0 0.0
    %794 = vmatpush.msra.mxu0 0.0
    %795 = vmatpush.msra.mxu0 0.0
    %796 = vmatpush.msra.mxu0 %v539
    %797 = vmatpush.msra.mxu0 %v531
    %798 = vmatpush.msra.mxu0 %v523
    %799 = vmatpush.msra.mxu0 %v515
    %800 = vmatmul.f32.gmra.mxu0 %v570
    %v801 = vpop.f32.mrf.mxu0
    %v802 = vadd.f32 %v551, %v801
    %803 = vmatmul.f32.gmra.mxu0 %v573
    %v804 = vpop.f32.mrf.mxu0
    %v805 = vadd.f32 %v556, %v804
    %806 = vmatmul.f32.gmra.mxu0 %v576
    %v807 = vpop.f32.mrf.mxu0
    %v808 = vadd.f32 %v561, %v807
    %809 = vmatmul.f32.gmra.mxu0 %v579
    %v810 = vpop.f32.mrf.mxu0
    %v811 = vadd.f32 %v566, %v810
    %812 = vdwg.mxu0
    %v813 = vmul.f32 %v599, 0.2
    %v814 = vmul.f32 %v628, 0.2
    %v815 = vmul.f32 %v657, 0.2
    %v816 = vmul.f32 %v686, 0.2
    %v817 = vmul.f32 %v715, 0.2
    %v818 = vmul.f32 %v744, 0.2
    %v819 = vmul.f32 %v773, 0.2
    %v820 = vmul.f32 %v802, 0.2
    %v821 = vmul.f32 %v602, 0.2
    %v822 = vmul.f32 %v631, 0.2
    %v823 = vmul.f32 %v660, 0.2
    %v824 = vmul.f32 %v689, 0.2
    %v825 = vmul.f32 %v718, 0.2
    %v826 = vmul.f32 %v747, 0.2
    %v827 = vmul.f32 %v776, 0.2
    %v828 = vmul.f32 %v805, 0.2
    %v829 = vmul.f32 %v605, 0.2
    %v830 = vmul.f32 %v634, 0.2
    %v831 = vmul.f32 %v663, 0.2
    %v832 = vmul.f32 %v692, 0.2
    %v833 = vmul.f32 %v721, 0.2
    %v834 = vmul.f32 %v750, 0.2
    %v835 = vmul.f32 %v779, 0.2
    %v836 = vmul.f32 %v808, 0.2
    %v837 = vmul.f32 %v608, 0.2
    %v838 = vmul.f32 %v637, 0.2
    %v839 = vmul.f32 %v666, 0.2
    %v840 = vmul.f32 %v695, 0.2
    %v841 = vmul.f32 %v724, 0.2
    %v842 = vmul.f32 %v753, 0.2
    %v843 = vmul.f32 %v782, 0.2
    %v844 = vmul.f32 %v811, 0.2
    %v845 = vmax.f32 %v599, %v813
    %v846 = vmax.f32 %v628, %v814
    %v847 = vmax.f32 %v657, %v815
    %v848 = vmax.f32 %v686, %v816
    %v849 = vmax.f32 %v715, %v817
    %v850 = vmax.f32 %v744, %v818
    %v851 = vmax.f32 %v773, %v819
    %v852 = vmax.f32 %v802, %v820
    %v853 = vmax.f32 %v602, %v821
    %v854 = vmax.f32 %v631, %v822
    %v855 = vmax.f32 %v660, %v823
    %v856 = vmax.f32 %v689, %v824
    %v857 = vmax.f32 %v718, %v825
    %v858 = vmax.f32 %v747, %v826
    %v859 = vmax.f32 %v776, %v827
    %v860 = vmax.f32 %v805, %v828
    %v861 = vmax.f32 %v605, %v829
    %v862 = vmax.f32 %v634, %v830
    %v863 = vmax.f32 %v663, %v831
    %v864 = vmax.f32 %v692, %v832
    %v865 = vmax.f32 %v721, %v833
    %v866 = vmax.f32 %v750, %v834
    %v867 = vmax.f32 %v779, %v835
    %v868 = vmax.f32 %v808, %v836
    %v869 = vmax.f32 %v608, %v837
    %v870 = vmax.f32 %v637, %v838
    %v871 = vmax.f32 %v666, %v839
    %v872 = vmax.f32 %v695, %v840
    %v873 = vmax.f32 %v724, %v841
    %v874 = vmax.f32 %v753, %v842
    %v875 = vmax.f32 %v782, %v843
    %v876 = vmax.f32 %v811, %v844
    %v877 = vld [vmem:[%s4] sm:$0x1]
    %v878 = vld [vmem:[#allocation4] sm:$0x1]
    %880 = vset.pattern.permute.xlu0 0
    %881 = vperm.xlu0 %880, %v878
    %v882 = vpop.permute.xlu0 %881
    %v884 = vperm.slane %v882, 0
    %v886 = vsel %vm568, %v877, 0
    %888 = vmatpush.msra.mxu0 0.0
    %889 = vmatpush.msra.mxu0 0.0
    %890 = vmatpush.msra.mxu0 0.0
    %891 = vmatpush.msra.mxu0 0.0
    %892 = vmatpush.msra.mxu0 0.0
    %893 = vmatpush.msra.mxu0 0.0
    %894 = vmatpush.msra.mxu0 0.0
    %895 = vmatpush.msra.mxu0 0.0
    %896 = vmatpush.msra.mxu0 0.0
    %897 = vmatpush.msra.mxu0 0.0
    %898 = vmatpush.msra.mxu0 0.0
    %899 = vmatpush.msra.mxu0 0.0
    %900 = vmatpush.msra.mxu0 %v869
    %901 = vmatpush.msra.mxu0 %v861
    %902 = vmatpush.msra.mxu0 %v853
    %903 = vmatpush.msra.mxu0 %v845
    %904 = vmatmul.f32.gmra.mxu0 %v886
    %v905 = vpop.f32.mrf.mxu0
    %v906 = vadd.f32 %v884, %v905
    %907 = vdwg.mxu0
    %908 = vmatpush.msra.mxu0 0.0
    %909 = vmatpush.msra.mxu0 0.0
    %910 = vmatpush.msra.mxu0 0.0
    %911 = vmatpush.msra.mxu0 0.0
    %912 = vmatpush.msra.mxu0 0.0
    %913 = vmatpush.msra.mxu0 0.0
    %914 = vmatpush.msra.mxu0 0.0
    %915 = vmatpush.msra.mxu0 0.0
    %916 = vmatpush.msra.mxu0 0.0
    %917 = vmatpush.msra.mxu0 0.0
    %918 = vmatpush.msra.mxu0 0.0
    %919 = vmatpush.msra.mxu0 0.0
    %920 = vmatpush.msra.mxu0 %v870
    %921 = vmatpush.msra.mxu0 %v862
    %922 = vmatpush.msra.mxu0 %v854
    %923 = vmatpush.msra.mxu0 %v846
    %924 = vmatmul.f32.gmra.mxu0 %v886
    %v925 = vpop.f32.mrf.mxu0
    %v926 = vadd.f32 %v884, %v925
    %927 = vdwg.mxu0
    %928 = vmatpush.msra.mxu0 0.0
    %929 = vmatpush.msra.mxu0 0.0
    %930 = vmatpush.msra.mxu0 0.0
    %931 = vmatpush.msra.mxu0 0.0
    %932 = vmatpush.msra.mxu0 0.0
    %933 = vmatpush.msra.mxu0 0.0
    %934 = vmatpush.msra.mxu0 0.0
    %935 = vmatpush.msra.mxu0 0.0
    %936 = vmatpush.msra.mxu0 0.0
    %937 = vmatpush.msra.mxu0 0.0
    %938 = vmatpush.msra.mxu0 0.0
    %939 = vmatpush.msra.mxu0 0.0
    %940 = vmatpush.msra.mxu0 %v871
    %941 = vmatpush.msra.mxu0 %v863
    %942 = vmatpush.msra.mxu0 %v855
    %943 = vmatpush.msra.mxu0 %v847
    %944 = vmatmul.f32.gmra.mxu0 %v886
    %v945 = vpop.f32.mrf.mxu0
    %v946 = vadd.f32 %v884, %v945
    %947 = vdwg.mxu0
    %948 = vmatpush.msra.mxu0 0.0
    %949 = vmatpush.msra.mxu0 0.0
    %950 = vmatpush.msra.mxu0 0.0
    %951 = vmatpush.msra.mxu0 0.0
    %952 = vmatpush.msra.mxu0 0.0
    %953 = vmatpush.msra.mxu0 0.0
    %954 = vmatpush.msra.mxu0 0.0
    %955 = vmatpush.msra.mxu0 0.0
    %956 = vmatpush.msra.mxu0 0.0
    %957 = vmatpush.msra.mxu0 0.0
    %958 = vmatpush.msra.mxu0 0.0
    %959 = vmatpush.msra.mxu0 0.0
    %960 = vmatpush.msra.mxu0 %v872
    %961 = vmatpush.msra.mxu0 %v864
    %962 = vmatpush.msra.mxu0 %v856
    %963 = vmatpush.msra.mxu0 %v848
    %964 = vmatmul.f32.gmra.mxu0 %v886
    %v965 = vpop.f32.mrf.mxu0
    %v966 = vadd.f32 %v884, %v965
    %967 = vdwg.mxu0
    %968 = vmatpush.msra.mxu0 0.0
    %969 = vmatpush.msra.mxu0 0.0
    %970 = vmatpush.msra.mxu0 0.0
    %971 = vmatpush.msra.mxu0 0.0
    %972 = vmatpush.msra.mxu0 0.0
    %973 = vmatpush.msra.mxu0 0.0
    %974 = vmatpush.msra.mxu0 0.0
    %975 = vmatpush.msra.mxu0 0.0
    %976 = vmatpush.msra.mxu0 0.0
    %977 = vmatpush.msra.mxu0 0.0
    %978 = vmatpush.msra.mxu0 0.0
    %979 = vmatpush.msra.mxu0 0.0
    %980 = vmatpush.msra.mxu0 %v873
    %981 = vmatpush.msra.mxu0 %v865
    %982 = vmatpush.msra.mxu0 %v857
    %983 = vmatpush.msra.mxu0 %v849
    %984 = vmatmul.f32.gmra.mxu0 %v886
    %v985 = vpop.f32.mrf.mxu0
    %v986 = vadd.f32 %v884, %v985
    %987 = vdwg.mxu0
    %988 = vmatpush.msra.mxu0 0.0
    %989 = vmatpush.msra.mxu0 0.0
    %990 = vmatpush.msra.mxu0 0.0
    %991 = vmatpush.msra.mxu0 0.0
    %992 = vmatpush.msra.mxu0 0.0
    %993 = vmatpush.msra.mxu0 0.0
    %994 = vmatpush.msra.mxu0 0.0
    %995 = vmatpush.msra.mxu0 0.0
    %996 = vmatpush.msra.mxu0 0.0
    %997 = vmatpush.msra.mxu0 0.0
    %998 = vmatpush.msra.mxu0 0.0
    %999 = vmatpush.msra.mxu0 0.0
    %1000 = vmatpush.msra.mxu0 %v874
    %1001 = vmatpush.msra.mxu0 %v866
    %1002 = vmatpush.msra.mxu0 %v858
    %1003 = vmatpush.msra.mxu0 %v850
    %1004 = vmatmul.f32.gmra.mxu0 %v886
    %v1005 = vpop.f32.mrf.mxu0
    %v1006 = vadd.f32 %v884, %v1005
    %1007 = vdwg.mxu0
    %1008 = vmatpush.msra.mxu0 0.0
    %1009 = vmatpush.msra.mxu0 0.0
    %1010 = vmatpush.msra.mxu0 0.0
    %1011 = vmatpush.msra.mxu0 0.0
    %1012 = vmatpush.msra.mxu0 0.0
    %1013 = vmatpush.msra.mxu0 0.0
    %1014 = vmatpush.msra.mxu0 0.0
    %1015 = vmatpush.msra.mxu0 0.0
    %1016 = vmatpush.msra.mxu0 0.0
    %1017 = vmatpush.msra.mxu0 0.0
    %1018 = vmatpush.msra.mxu0 0.0
    %1019 = vmatpush.msra.mxu0 0.0
    %1020 = vmatpush.msra.mxu0 %v875
    %1021 = vmatpush.msra.mxu0 %v867
    %1022 = vmatpush.msra.mxu0 %v859
    %1023 = vmatpush.msra.mxu0 %v851
    %1024 = vmatmul.f32.gmra.mxu0 %v886
    %v1025 = vpop.f32.mrf.mxu0
    %v1026 = vadd.f32 %v884, %v1025
    %1027 = vdwg.mxu0
    %1028 = vmatpush.msra.mxu0 0.0
    %1029 = vmatpush.msra.mxu0 0.0
    %1030 = vmatpush.msra.mxu0 0.0
    %1031 = vmatpush.msra.mxu0 0.0
    %1032 = vmatpush.msra.mxu0 0.0
    %1033 = vmatpush.msra.mxu0 0.0
    %1034 = vmatpush.msra.mxu0 0.0
    %1035 = vmatpush.msra.mxu0 0.0
    %1036 = vmatpush.msra.mxu0 0.0
    %1037 = vmatpush.msra.mxu0 0.0
    %1038 = vmatpush.msra.mxu0 0.0
    %1039 = vmatpush.msra.mxu0 0.0
    %1040 = vmatpush.msra.mxu0 %v876
    %1041 = vmatpush.msra.mxu0 %v868
    %1042 = vmatpush.msra.mxu0 %v860
    %1043 = vmatpush.msra.mxu0 %v852
    %1044 = vmatmul.f32.gmra.mxu0 %v886
    %v1045 = vpop.f32.mrf.mxu0
    %v1046 = vadd.f32 %v884, %v1045
    %1047 = vdwg.mxu0
    %v1048 = vadd.f32 %v64, 1.0
    %v1049 = vadd.f32 %v65, 1.0
    %v1050 = vadd.f32 %v66, 1.0
    %v1051 = vadd.f32 %v67, 1.0
    %v1052 = vmul.f32 %v1048, 0.5
    %v1053 = vmul.f32 %v1049, 0.5
    %v1054 = vmul.f32 %v1050, 0.5
    %v1055 = vmul.f32 %v1051, 0.5
    %v1056 = vsub.f32 0.0, %v906
    %v1057 = vsub.f32 0.0, %v926
    %v1058 = vsub.f32 0.0, %v946
    %v1059 = vsub.f32 0.0, %v966
    %v1060 = vsub.f32 0.0, %v986
    %v1061 = vsub.f32 0.0, %v1006
    %v1062 = vsub.f32 0.0, %v1026
    %v1063 = vsub.f32 0.0, %v1046
    %v1064 = vmax.f32 %v1056, 0.0
    %v1065 = vmax.f32 %v1057, 0.0
    %v1066 = vmax.f32 %v1058, 0.0
    %v1067 = vmax.f32 %v1059, 0.0
    %v1068 = vmax.f32 %v1060, 0.0
    %v1069 = vmax.f32 %v1061, 0.0
    %v1070 = vmax.f32 %v1062, 0.0
    %v1071 = vmax.f32 %v1063, 0.0
    %v1072 = vand.u32 2147483647, %v906
    %v1073 = vand.u32 2147483647, %v926
    %v1074 = vand.u32 2147483647, %v946
    %v1075 = vand.u32 2147483647, %v966
    %v1076 = vand.u32 2147483647, %v986
    %v1077 = vand.u32 2147483647, %v1006
    %v1078 = vand.u32 2147483647, %v1026
    %v1079 = vand.u32 2147483647, %v1046
    %v1080 = vsub.f32 0.0, %v1072
    %v1081 = vsub.f32 0.0, %v1073
    %v1082 = vsub.f32 0.0, %v1074
    %v1083 = vsub.f32 0.0, %v1075
    %v1084 = vsub.f32 0.0, %v1076
    %v1085 = vsub.f32 0.0, %v1077
    %v1086 = vsub.f32 0.0, %v1078
    %v1087 = vsub.f32 0.0, %v1079
    %v1088 = vmul.f32 %v1080, 1.442695
    %v1089 = vpow.pop %v1088
    %v1090 = vmul.f32 %v1081, 1.442695
    %v1091 = vpow.pop %v1090
    %v1092 = vmul.f32 %v1082, 1.442695
    %v1093 = vpow.pop %v1092
    %v1094 = vmul.f32 %v1083, 1.442695
    %v1095 = vpow.pop %v1094
    %v1096 = vmul.f32 %v1084, 1.442695
    %v1097 = vpow.pop %v1096
    %v1098 = vmul.f32 %v1085, 1.442695
    %v1099 = vpow.pop %v1098
    %v1100 = vmul.f32 %v1086, 1.442695
    %v1101 = vpow.pop %v1100
    %v1102 = vmul.f32 %v1087, 1.442695
    %v1103 = vpow.pop %v1102
    %v1104 = vadd.f32 %v1089, 1.0
    %v1105 = vadd.f32 %v1091, 1.0
    %v1106 = vadd.f32 %v1093, 1.0
    %v1107 = vadd.f32 %v1095, 1.0
    %v1108 = vadd.f32 %v1097, 1.0
    %v1109 = vadd.f32 %v1099, 1.0
    %v1110 = vadd.f32 %v1101, 1.0
    %v1111 = vadd.f32 %v1103, 1.0
    %v1112 = vlog2.pop %v1104
    %v1113 = vmul.f32 %v1112, 0.6931472
    %v1114 = vlog2.pop %v1105
    %v1115 = vmul.f32 %v1114, 0.6931472
    %v1116 = vlog2.pop %v1106
    %v1117 = vmul.f32 %v1116, 0.6931472
    %v1118 = vlog2.pop %v1107
    %v1119 = vmul.f32 %v1118, 0.6931472
    %v1120 = vlog2.pop %v1108
    %v1121 = vmul.f32 %v1120, 0.6931472
    %v1122 = vlog2.pop %v1109
    %v1123 = vmul.f32 %v1122, 0.6931472
    %v1124 = vlog2.pop %v1110
    %v1125 = vmul.f32 %v1124, 0.6931472
    %v1126 = vlog2.pop %v1111
    %v1127 = vmul.f32 %v1126, 0.6931472
    %v1128 = vadd.f32 %v1064, %v1113
    %v1129 = vadd.f32 %v1065, %v1115
    %v1130 = vadd.f32 %v1066, %v1117
    %v1131 = vadd.f32 %v1067, %v1119
    %v1132 = vadd.f32 %v1068, %v1121
    %v1133 = vadd.f32 %v1069, %v1123
    %v1134 = vadd.f32 %v1070, %v1125
    %v1135 = vadd.f32 %v1071, %v1127
    %v1136 = vsub.f32 1.0, %v1052
    %v1137 = vsub.f32 1.0, %v1053
    %v1138 = vsub.f32 1.0, %v1054
    %v1139 = vsub.f32 1.0, %v1055
    %v1148 = vrot.slane %v926, 4
    %v1149 = vrot.slane %v966, 4
    %v1150 = vrot.slane %v1006, 4
    %v1151 = vrot.slane %v1046, 4
    %v1152 = vsel %vm99, %v906, %v1148
    %v1153 = vsel %vm99, %v946, %v1149
    %v1154 = vsel %vm99, %v986, %v1150
    %v1155 = vsel %vm99, %v1026, %v1151
    %v1156 = vrot.slane %v1152, 6
    %v1157 = vrot.slane %v1153, 6
    %v1158 = vrot.slane %v1154, 6
    %v1159 = vrot.slane %v1155, 6
    %v1164 = vmul.f32 %v1136, %v1156
    %v1165 = vmul.f32 %v1137, %v1157
    %v1166 = vmul.f32 %v1138, %v1158
    %v1167 = vmul.f32 %v1139, %v1159
    %v1172 = vperm.slane %v1164, 2
    %v1173 = vperm.slane %v1164, 6
    %v1174 = vperm.slane %v1165, 2
    %v1175 = vperm.slane %v1165, 6
    %v1176 = vperm.slane %v1166, 2
    %v1177 = vperm.slane %v1166, 6
    %v1178 = vperm.slane %v1167, 2
    %v1179 = vperm.slane %v1167, 6
    %v1188 = vadd.f32 %v1128, %v1172
    %v1189 = vadd.f32 %v1129, %v1173
    %v1190 = vadd.f32 %v1130, %v1174
    %v1191 = vadd.f32 %v1131, %v1175
    %v1192 = vadd.f32 %v1132, %v1176
    %v1193 = vadd.f32 %v1133, %v1177
    %v1194 = vadd.f32 %v1134, %v1178
    %v1195 = vadd.f32 %v1135, %v1179
    %s1196 = sadd.s32 0, 0
    %s1197 = smul.u32 %s1196, 1024
    %s1198 = sadd.s32 %s1197, 1024
    %p1199 = scmp.gt.s32.totalorder %s1198, 1000
    %p1200 = scmp.le.s32.totalorder %s1198, 1000
    // Predicated region
    $region30: #{tpu_custom_call.1} parent=1 // pred_check
      %p1201 = pneg %p1200
    $region31: #{tpu_custom_call.1} parent=1 // pred_check_branch
      %1203 = sbr.rel (%p1201) target = $region33
    $region32: #{tpu_custom_call.1} parent=1 // pred_region
      %v1204 = vld [vmem:[#allocation3] sm:$0xff]
      %v1213 = vrot.slane %v1189, 7
      %v1214 = vrot.slane %v1190, 6
      %v1215 = vrot.slane %v1191, 5
      %v1216 = vrot.slane %v1192, 4
      %v1217 = vrot.slane %v1193, 3
      %v1218 = vrot.slane %v1194, 2
      %v1219 = vrot.slane %v1195, 1
      %v1220 = vsel %vm87, %v1188, %v1213
      %v1221 = vsel %vm89, %v1214, %v1215
      %v1222 = vsel %vm91, %v1220, %v1221
      %v1223 = vsel %vm93, %v1216, %v1217
      %v1224 = vsel %vm95, %v1218, %v1219
      %v1225 = vsel %vm97, %v1223, %v1224
      %v1226 = vsel %vm99, %v1222, %v1225
      %v1228 = vadd.f32 %v1204, %v1226
      %1229 = vst [vmem:[#allocation3] sm:$0xff] %v1228
    $region33: #{tpu_custom_call.1} parent=1 // pred_fallthru
      _
    // Predicated region
    $region34: #{tpu_custom_call.1} parent=1 // pred_check
      %p1230 = pneg %p1199
    $region35: #{tpu_custom_call.1} parent=1 // pred_check_branch
      %1232 = sbr.rel (%p1230) target = $region37
    $region36: #{tpu_custom_call.1} parent=1 // pred_region
      %v1233 = vlaneseq
      %v1234 = vand.u32 %v1233, 127
      %v1235 = vadd.s32 %v1234, 128
      %v1236 = vadd.s32 %v1234, 256
      %v1237 = vadd.s32 %v1234, 384
      %v1238 = vadd.s32 %v1234, 512
      %v1239 = vadd.s32 %v1234, 640
      %v1240 = vadd.s32 %v1234, 768
      %v1241 = vadd.s32 %v1234, 896
      %v1242 = vstv %s1197
      %v1243 = vadd.s32 %v1234, %v1242
      %v1244 = vadd.s32 %v1235, %v1242
      %v1245 = vadd.s32 %v1236, %v1242
      %v1246 = vadd.s32 %v1237, %v1242
      %v1247 = vadd.s32 %v1238, %v1242
      %v1248 = vadd.s32 %v1239, %v1242
      %v1249 = vadd.s32 %v1240, %v1242
      %v1250 = vadd.s32 %v1241, %v1242
      %v1251 = vld [vmem:[#allocation3] sm:$0xff]
      %vm1252 = vcmp.lt.s32.totalorder %v1243, 1000
      %vm1253 = vcmp.lt.s32.totalorder %v1244, 1000
      %vm1254 = vcmp.lt.s32.totalorder %v1245, 1000
      %vm1255 = vcmp.lt.s32.totalorder %v1246, 1000
      %vm1256 = vcmp.lt.s32.totalorder %v1247, 1000
      %vm1257 = vcmp.lt.s32.totalorder %v1248, 1000
      %vm1258 = vcmp.lt.s32.totalorder %v1249, 1000
      %vm1259 = vcmp.lt.s32.totalorder %v1250, 1000
      %v1260 = vsel %vm1252, %v1188, 0.0
      %v1261 = vsel %vm1253, %v1189, 0.0
      %v1262 = vsel %vm1254, %v1190, 0.0
      %v1263 = vsel %vm1255, %v1191, 0.0
      %v1264 = vsel %vm1256, %v1192, 0.0
      %v1265 = vsel %vm1257, %v1193, 0.0
      %v1266 = vsel %vm1258, %v1194, 0.0
      %v1267 = vsel %vm1259, %v1195, 0.0
      %v1276 = vrot.slane %v1261, 7
      %v1277 = vrot.slane %v1262, 6
      %v1278 = vrot.slane %v1263, 5
      %v1279 = vrot.slane %v1264, 4
      %v1280 = vrot.slane %v1265, 3
      %v1281 = vrot.slane %v1266, 2
      %v1282 = vrot.slane %v1267, 1
      %v1283 = vsel %vm87, %v1260, %v1276
      %v1284 = vsel %vm89, %v1277, %v1278
      %v1285 = vsel %vm91, %v1283, %v1284
      %v1286 = vsel %vm93, %v1279, %v1280
      %v1287 = vsel %vm95, %v1281, %v1282
      %v1288 = vsel %vm97, %v1286, %v1287
      %v1289 = vsel %vm99, %v1285, %v1288
      %v1291 = vadd.f32 %v1251, %v1289
      %1292 = vst [vmem:[#allocation3] sm:$0xff] %v1291
    $region37: #{tpu_custom_call.1} parent=1 // pred_fallthru
      _
    // Predicated region
    $region38: #{tpu_custom_call.1} parent=1 // pred_check
      %p1293 = pneg %p48
    $region39: #{tpu_custom_call.1} parent=1 // pred_check_branch
      %1295 = sbr.rel (%p1293) target = $region41
    $region40: #{tpu_custom_call.1} parent=1 // pred_region
      %v1296 = vld [vmem:[#allocation3] sm:$0xff]
      %v1298 = vperm.slane %v1296, 0
      %v1299 = vperm.slane %v1296, 1
      %v1300 = vperm.slane %v1296, 2
      %v1301 = vperm.slane %v1296, 3
      %v1302 = vperm.slane %v1296, 4
      %v1303 = vperm.slane %v1296, 5
      %v1304 = vperm.slane %v1296, 6
      %v1305 = vperm.slane %v1296, 7
      %v1314 = vsel %vm87, %v1298, 0.0
      %v1315 = vsel %vm87, %v1299, 0.0
      %v1316 = vadd.f32 %v1314, %v1315
      %v1317 = vsel %vm87, %v1300, 0.0
      %v1318 = vadd.f32 %v1316, %v1317
      %v1319 = vsel %vm87, %v1301, 0.0
      %v1320 = vadd.f32 %v1318, %v1319
      %v1321 = vsel %vm87, %v1302, 0.0
      %v1322 = vadd.f32 %v1320, %v1321
      %v1323 = vsel %vm87, %v1303, 0.0
      %v1324 = vadd.f32 %v1322, %v1323
      %v1325 = vsel %vm87, %v1304, 0.0
      %v1326 = vadd.f32 %v1324, %v1325
      %v1327 = vsel %vm87, %v1305, 0.0
      %v1328 = vadd.f32 %v1326, %v1327
      %1329 = vadd.xlane.f32.xlu0 %v1328
      %v1330 = vpop.xlane.xlu0 %1329
      %v1331 = vrot.slane %v1330, 4
      %v1332 = vadd.f32 %v1330, %v1331
      %v1333 = vrot.slane %v1332, 2
      %v1334 = vadd.f32 %v1332, %v1333
      %v1335 = vrot.slane %v1334, 1
      %v1336 = vadd.f32 %v1334, %v1335
      %s1337 = vtos %v1336
      %v1338 = vstv %s1337
      %1339 = vst [vmem:[#allocation5] sm:$0xff] %v1338
    $region41: #{tpu_custom_call.1} parent=1 // pred_fallthru
      _
    // Predicated region
    $region42: #{tpu_custom_call.1} parent=1 // pred_check
      _
    $region43: #{tpu_custom_call.1} parent=1 // pred_check_branch
      %1341 = sbr.rel (0) target = $region45
    $region44: #{tpu_custom_call.1} parent=1 // pred_region
      %1343 = vsyncadd [#allocation6], 0
      %s1345 = sshll.u32 [#allocation5], 4
      %s1346 = int_to_ptr.vmem [resolvable:$true] %s1345
      %s1347 = sshll.u32 %s6, 4
      %s1348 = int_to_ptr.hbm [resolvable:$true] %s1347
      %1350 = dma.vmem_to_hbm [thread:$0]  %s1346, 128, %s1348, [#allocation6]
    $region45: #{tpu_custom_call.1} parent=1 // pred_fallthru
      _
    // Predicated region
    $region46: #{tpu_custom_call.1} parent=1 // pred_check
      _
    $region47: #{tpu_custom_call.1} parent=1 // pred_check_branch
      %1352 = sbr.rel (0) target = $region49
    $region48: #{tpu_custom_call.1} parent=1 // pred_region
      %1354 = dma.done [#allocation6], 128
    $region49: #{tpu_custom_call.1} parent=1 // pred_fallthru
      _
    %1355 = vsyncpa [#allocation6], 1

</llo_original>
